<compile_context>
chip_gen: v5e
topology: v5e:2x2
jax: 0.10.0
libtpu: 0.0.40
codegen_flags: <defaults>
</compile_context>

<pallas_src>
import functools

import jax
import jax.numpy as jnp
from jax import lax
from jax.experimental import pallas as pl
from jax.experimental.pallas import tpu as pltpu


def _agent_kernel(a_ref, x_ref, w_ref, b_ref, out_ref, *, H, F, r1, r2, r3, rh):
    """One grid step processes G graphs.

    a_ref : [G, N, N]  bf16 GCN-normalized adjacency (NOT transposed)
    x_ref : [G, N, F]  bf16 node features (node-major)
    w_ref : bf16 packed weight slab
            rows [r1:r1+F] = W1 (F x H), [r2:r2+H] = W2, [r3:r3+H] = W3,
            row rh = wp^T (1 x H), row rh+1 = wv^T (1 x H)
    b_ref : [8, max(H,2)] f32 biases; rows 0..2 = b1,b2,b3; row 3 = [bp, bv]
    out_ref: [2, G*N]   row 0 = per-node policy, row 1 = per-graph value
                        broadcast over that graph's N lanes (lane-dense store)
    """
    G, N, _ = a_ref.shape
    GN = G * N
    f32, bf16 = jnp.float32, jnp.bfloat16

    a = a_ref[...]                                            # [G, N, N] bf16

    def gcn_layer(t2d, b_row):
        # t2d: [G*N, H] f32 transformed features, stacked over the G graphs.
        t = t2d.reshape(G, N, H).astype(bf16)
        # h[g,n,k] = sum_m A[g,n,m] * t[g,m,k]  (A streamed as MXU LHS)
        h = jnp.einsum('gnm,gmk->gnk', a, t, preferred_element_type=f32)
        return jnp.maximum(h + b_row[None, :, :], 0.0)        # [G, N, H] f32

    # --- GCNConv 1 + ReLU : effective M = G*N rows through the MXU ---
    xf = x_ref[...].reshape(GN, F)                            # bf16
    t = jnp.dot(xf, w_ref[r1:r1 + F, 0:H], preferred_element_type=f32)
    h = gcn_layer(t, b_ref[0:1, 0:H])

    # --- GCNConv 2 + ReLU ---
    t = jnp.dot(h.reshape(GN, H).astype(bf16), w_ref[r2:r2 + H, 0:H],
                preferred_element_type=f32)
    h = gcn_layer(t, b_ref[1:2, 0:H])

    # --- GCNConv 3 + ReLU ---
    t = jnp.dot(h.reshape(GN, H).astype(bf16), w_ref[r3:r3 + H, 0:H],
                preferred_element_type=f32)
    h = gcn_layer(t, b_ref[2:3, 0:H])

    h2d = h.reshape(GN, H).astype(bf16)                       # [G*N, H]

    # --- policy head: lane-dense [1, G*N] row ---
    wp_row = w_ref[rh:rh + 1, 0:H]                            # [1, H]
    proba_row = lax.dot_general(
        wp_row, h2d, (((1,), (1,)), ((), ())),
        preferred_element_type=f32) + b_ref[3:4, 0:1]         # [1, G*N]

    # --- value head: per-graph mean over nodes, broadcast back over each
    #     graph's N lanes so the store stays lane-dense ---
    s = jnp.sum(h, axis=1) * (1.0 / N)                        # [G, H] f32
    hbar = jnp.broadcast_to(s[:, None, :], (G, N, H)).reshape(GN, H)
    wv_row = w_ref[rh + 1:rh + 2, 0:H]                        # [1, H]
    value_row = lax.dot_general(
        wv_row, hbar.astype(bf16), (((1,), (1,)), ((), ())),
        preferred_element_type=f32) + b_ref[3:4, 1:2]         # [1, G*N]

    out_ref[0:1, :] = proba_row
    out_ref[1:2, :] = value_row


def _align8(n):
    return ((n + 7) // 8) * 8


def pack_params(params, ndim, hidden_dim):
    """Pack the 12 small tensors into one bf16 weight slab + one f32 bias slab.

    Each weight section starts at a multiple of 8 rows so static slices never
    cross an (8,128) tile boundary (zero-cost views for any H, F).
    """
    H, F = hidden_dim, ndim
    r1 = 0
    r2 = _align8(F)
    r3 = r2 + _align8(H)
    rh = r3 + _align8(H)
    rows = rh + 8

    w_slab = jnp.zeros((rows, H), jnp.float32)
    w_slab = w_slab.at[r1:r1 + F, :].set(params["w1"])
    w_slab = w_slab.at[r2:r2 + H, :].set(params["w2"])
    w_slab = w_slab.at[r3:r3 + H, :].set(params["w3"])
    w_slab = w_slab.at[rh, :].set(params["wp"][:, 0])
    w_slab = w_slab.at[rh + 1, :].set(params["wv"][:, 0])

    bc = max(H, 2)
    b_slab = jnp.zeros((8, bc), jnp.float32)
    b_slab = b_slab.at[0, 0:H].set(params["b1"].reshape(H))
    b_slab = b_slab.at[1, 0:H].set(params["b2"].reshape(H))
    b_slab = b_slab.at[2, 0:H].set(params["b3"].reshape(H))
    b_slab = b_slab.at[3, 0].set(params["bp"].reshape(()))
    b_slab = b_slab.at[3, 1].set(params["bv"].reshape(()))
    return w_slab.astype(jnp.bfloat16), b_slab, (r1, r2, r3, rh)


def agent_forward(a_norm, x, params, hidden_dim):
    """Batched forward.

    a_norm : [B, N, N] GCN-normalized dense adjacency per graph (pass bf16 to
             avoid an extra HBM cast pass on large graphs).
    x      : [B, N, F] node features per graph.
    returns (proba [B, N, 1], value [B, 1, 1])
    """
    B, N, F = x.shape
    H = hidden_dim

    # Graphs per grid step: amortize per-step overhead and make the output
    # row >= 128 lanes wide when N is small (lane-dense stores).
    G = 1 if N >= 128 else -(-128 // N)
    steps = -(-B // G)
    Bp = steps * G

    a_b = a_norm.astype(jnp.bfloat16)        # bf16 inputs, f32 accumulation
    x_b = x.astype(jnp.bfloat16)
    if Bp != B:                              # pad with dummy graphs (discarded)
        a_b = jnp.pad(a_b, ((0, Bp - B), (0, 0), (0, 0)))
        x_b = jnp.pad(x_b, ((0, Bp - B), (0, 0), (0, 0)))

    w_slab, b_slab, (r1, r2, r3, rh) = pack_params(params, F, H)
    kernel = functools.partial(_agent_kernel, H=H, F=F,
                               r1=r1, r2=r2, r3=r3, rh=rh)

    GN = G * N
    flops = 2 * Bp * N * (3 * N * H + F * H + 2 * H * H + 2 * H)
    bytes_accessed = int(2 * Bp * (N * N + N * F) + 4 * steps * 2 * GN
                         + 2 * w_slab.size + 4 * b_slab.size)

    # Explicit, generation-aware VMEM budget: double-buffered blocks + f32
    # intermediates + slabs, clamped to leave headroom (v7x: 64 MiB physical /
    # 32 MiB default scoped; v5e default scoped is only 16 MiB).
    blk_bytes = 2 * G * N * N + 2 * G * N * F + 4 * 2 * GN
    scratch_bytes = 6 * GN * max(H, F) * 4 + 2 * w_slab.size + 4 * b_slab.size
    vmem_limit = int(min(96 << 20,
                         max(32 << 20, 2 * blk_bytes + scratch_bytes + (2 << 20))))

    out = pl.pallas_call(
        kernel,
        out_shape=jax.ShapeDtypeStruct((steps, 2, GN), jnp.float32),
        grid=(steps,),
        in_specs=[
            pl.BlockSpec((G, N, N), lambda s: (s, 0, 0)),      # A, G graphs/step
            pl.BlockSpec((G, N, F), lambda s: (s, 0, 0)),      # X, G graphs/step
            pl.BlockSpec(w_slab.shape, lambda s: (0, 0)),      # resident weights
            pl.BlockSpec(b_slab.shape, lambda s: (0, 0)),      # resident biases
        ],
        out_specs=pl.BlockSpec((None, 2, GN), lambda s: (s, 0, 0)),
        compiler_params=pltpu.CompilerParams(
            dimension_semantics=("parallel",),   # v7x: 2 TCs share the steps
            vmem_limit_bytes=vmem_limit),
        cost_estimate=pl.CostEstimate(
            flops=flops, transcendentals=0, bytes_accessed=bytes_accessed),
    )(a_b, x_b, w_slab, b_slab)

    out = out.reshape(steps, 2, G, N)
    proba = out[:, 0].reshape(Bp, N)[:B, :, None]               # [B, N, 1]
    value = out[:, 1, :, 0].reshape(Bp)[:B][:, None, None]      # [B, 1, 1]
    return proba, value


def build_norm_adj(edge_index, num_nodes):
    """Dense GCN-normalized adjacency: D^-1/2 (A + I) D^-1/2.

    edge_index: [2, E] (src -> dst means message from src to dst, matching
    torch_geometric's GCNConv convention).  Self-loops are only added for
    nodes that do not already have one (add_remaining_self_loops semantics).
    """
    src, dst = edge_index[0], edge_index[1]
    a = jnp.zeros((num_nodes, num_nodes), jnp.float32)
    a = a.at[dst, src].add(1.0)
    diag = jnp.arange(num_nodes)
    a = a.at[diag, diag].set(jnp.maximum(a[diag, diag], 1.0))
    deg = jnp.sum(a, axis=1)
    dinv = jnp.where(deg > 0, 1.0 / jnp.sqrt(deg), 0.0)
    return dinv[:, None] * a * dinv[None, :]


def init_params(key, ndim, hidden_dim):
    keys = jax.random.split(key, 10)
    scale = 0.1
    return {
        "w1": scale * jax.random.normal(keys[0], (ndim, hidden_dim), jnp.float32),
        "b1": scale * jax.random.normal(keys[1], (1, hidden_dim), jnp.float32),
        "w2": scale * jax.random.normal(keys[2], (hidden_dim, hidden_dim), jnp.float32),
        "b2": scale * jax.random.normal(keys[3], (1, hidden_dim), jnp.float32),
        "w3": scale * jax.random.normal(keys[4], (hidden_dim, hidden_dim), jnp.float32),
        "b3": scale * jax.random.normal(keys[5], (1, hidden_dim), jnp.float32),
        "wp": scale * jax.random.normal(keys[6], (hidden_dim, 1), jnp.float32),
        "bp": scale * jax.random.normal(keys[7], (1, 1), jnp.float32),
        "wv": scale * jax.random.normal(keys[8], (hidden_dim, 1), jnp.float32),
        "bv": scale * jax.random.normal(keys[9], (1, 1), jnp.float32),
    }


def reference_forward(a_norm, x, p):
    """Pure-JAX reference, node-major (matches the PyTorch module)."""
    h = x
    for w, b in ((p["w1"], p["b1"]), (p["w2"], p["b2"]), (p["w3"], p["b3"])):
        h = jnp.maximum(a_norm @ (h @ w) + b, 0.0)
    mean_val = jnp.mean(h, axis=0, keepdims=True)
    return h @ p["wp"] + p["bp"], mean_val @ p["wv"] + p["bv"]


if __name__ == "__main__":
    B = 20         # graphs per batch (pads to 32 -> 2 grid steps of 16 graphs)
    N = 8          # nodes per graph
    NDIM = 4       # input feature dim
    HIDDEN = 8     # hidden_dim (module default)

    key = jax.random.PRNGKey(0)
    k_x, k_p = jax.random.split(key)

    # deterministic node features and B small undirected circulant graphs
    x_all = jax.random.normal(k_x, (B, N, NDIM), jnp.float32)
    adjs = []
    for g in range(B):
        stride = 1 + (g % (N - 1))
        src = jnp.arange(N, dtype=jnp.int32)
        dst = (src + stride) % N
        edge_index = jnp.stack([jnp.concatenate([src, dst]),
                                jnp.concatenate([dst, src])], axis=0)   # [2, 2N]
        adjs.append(build_norm_adj(edge_index, N))
    a_norm = jnp.stack(adjs, axis=0)                                    # [B, N, N]

    params = init_params(k_p, NDIM, HIDDEN)

    proba, value = agent_forward(a_norm, x_all, params, HIDDEN)
    jax.block_until_ready((proba, value))

    assert proba.shape == (B, N, 1) and value.shape == (B, 1, 1)

    # Reference on the bf16-rounded inputs (the kernel casts A/X to bf16 with
    # f32 accumulation); tolerance covers in-kernel bf16 intermediate rounding.
    a_r = a_norm.astype(jnp.bfloat16).astype(jnp.float32)
    x_r = x_all.astype(jnp.bfloat16).astype(jnp.float32)
    for g in range(B):
        ref_p, ref_v = reference_forward(a_r[g], x_r[g], params)
        assert jnp.allclose(proba[g], ref_p, atol=2e-2, rtol=2e-2), \
            f"policy mismatch on graph {g}"
        assert jnp.allclose(value[g], ref_v, atol=2e-2, rtol=2e-2), \
            f"value mismatch on graph {g}"

    print("KERNEL_OK")
</pallas_src>

<mosaic_0001>
module attributes {stable_mosaic.version = 11 : i64} {
  func.func @_agent_kernel(%arg0: i32, %arg1: memref<16x8x8xbf16, #tpu.memory_space<vmem>>, %arg2: memref<16x8x4xbf16, #tpu.memory_space<vmem>>, %arg3: memref<32x8xbf16, #tpu.memory_space<vmem>>, %arg4: memref<8x8xf32, #tpu.memory_space<vmem>>, %arg5: memref<1x2x128xf32, #tpu.memory_space<vmem>>) attributes {dimension_semantics = [#tpu.dimension_semantics<parallel>], iteration_bounds = array<i64: 2>, scalar_prefetch = 0 : i64, scratch_operands = 0 : i64, tpu.core_type = #tpu.core_type<tc>, window_params = [{transform_indices = @transform_0, window_bounds = array<i64: 16, 8, 8>}, {transform_indices = @transform_1, window_bounds = array<i64: 16, 8, 4>}, {pipeline_mode = #tpu.pipeline_mode<synchronous>, transform_indices = @transform_2, window_bounds = array<i64: 32, 8>}, {pipeline_mode = #tpu.pipeline_mode<synchronous>, transform_indices = @transform_3, window_bounds = array<i64: 8, 8>}, {transform_indices = @transform_4, window_bounds = array<i64: 1, 2, 128>}]} {
    %c0 = arith.constant 0 : index
    %c0_0 = arith.constant 0 : index
    %c0_1 = arith.constant 0 : index
    %0 = vector.load %arg1[%c0, %c0_0, %c0_1] : memref<16x8x8xbf16, #tpu.memory_space<vmem>>, vector<16x8x8xbf16>
    %c0_2 = arith.constant 0 : index
    %c0_3 = arith.constant 0 : index
    %c0_4 = arith.constant 0 : index
    %1 = vector.load %arg2[%c0_2, %c0_3, %c0_4] : memref<16x8x4xbf16, #tpu.memory_space<vmem>>, vector<16x8x4xbf16>
    %2 = vector.shape_cast %1 : vector<16x8x4xbf16> to vector<128x4xbf16>
    %c0_5 = arith.constant 0 : index
    %c0_6 = arith.constant 0 : index
    %3 = vector.load %arg3[%c0_5, %c0_6] : memref<32x8xbf16, #tpu.memory_space<vmem>>, vector<4x8xbf16>
    %cst = arith.constant dense<0.000000e+00> : vector<128x8xf32>
    %4 = tpu.matmul %2, %3, %cst {dimension_numbers = #tpu.dot_dimension_numbers<[1], [0], [0], [1], [0, 0, 1, 1], [], []>} : vector<128x4xbf16>, vector<4x8xbf16>, vector<128x8xf32> -> vector<128x8xf32>
    %c0_7 = arith.constant 0 : index
    %c0_8 = arith.constant 0 : index
    %5 = vector.load %arg4[%c0_7, %c0_8] : memref<8x8xf32, #tpu.memory_space<vmem>>, vector<1x8xf32>
    %6 = vector.shape_cast %4 : vector<128x8xf32> to vector<16x8x8xf32>
    %7 = arith.truncf %6 : vector<16x8x8xf32> to vector<16x8x8xbf16>
    "tpu.trace_start"() <{level = 10 : i32, message = "gnm,gmk->gnk"}> : () -> ()
    %cst_9 = arith.constant dense<0.000000e+00> : vector<16x8x8xf32>
    %8 = tpu.matmul %0, %7, %cst_9 {dimension_numbers = #tpu.dot_dimension_numbers<[2], [1], [1], [2], [0, 0, 0, 1, 1, 2], [0], [0]>} : vector<16x8x8xbf16>, vector<16x8x8xbf16>, vector<16x8x8xf32> -> vector<16x8x8xf32>
    "tpu.trace_stop"() : () -> ()
    %9 = vector.shape_cast %5 : vector<1x8xf32> to vector<1x1x8xf32>
    %10 = vector.broadcast %9 : vector<1x1x8xf32> to vector<16x8x8xf32>
    %11 = arith.addf %8, %10 : vector<16x8x8xf32>
    %cst_10 = arith.constant 0.000000e+00 : f32
    %12 = vector.broadcast %cst_10 : f32 to vector<16x8x8xf32>
    %13 = arith.maximumf %11, %12 : vector<16x8x8xf32>
    %14 = vector.shape_cast %13 : vector<16x8x8xf32> to vector<128x8xf32>
    %15 = arith.truncf %14 : vector<128x8xf32> to vector<128x8xbf16>
    %c8 = arith.constant 8 : index
    %c0_11 = arith.constant 0 : index
    %16 = vector.load %arg3[%c8, %c0_11] : memref<32x8xbf16, #tpu.memory_space<vmem>>, vector<8x8xbf16>
    %cst_12 = arith.constant dense<0.000000e+00> : vector<128x8xf32>
    %17 = tpu.matmul %15, %16, %cst_12 {dimension_numbers = #tpu.dot_dimension_numbers<[1], [0], [0], [1], [0, 0, 1, 1], [], []>} : vector<128x8xbf16>, vector<8x8xbf16>, vector<128x8xf32> -> vector<128x8xf32>
    %c1 = arith.constant 1 : index
    %c0_13 = arith.constant 0 : index
    %18 = vector.load %arg4[%c1, %c0_13] : memref<8x8xf32, #tpu.memory_space<vmem>>, vector<1x8xf32>
    %19 = vector.shape_cast %17 : vector<128x8xf32> to vector<16x8x8xf32>
    %20 = arith.truncf %19 : vector<16x8x8xf32> to vector<16x8x8xbf16>
    "tpu.trace_start"() <{level = 10 : i32, message = "gnm,gmk->gnk"}> : () -> ()
    %cst_14 = arith.constant dense<0.000000e+00> : vector<16x8x8xf32>
    %21 = tpu.matmul %0, %20, %cst_14 {dimension_numbers = #tpu.dot_dimension_numbers<[2], [1], [1], [2], [0, 0, 0, 1, 1, 2], [0], [0]>} : vector<16x8x8xbf16>, vector<16x8x8xbf16>, vector<16x8x8xf32> -> vector<16x8x8xf32>
    "tpu.trace_stop"() : () -> ()
    %22 = vector.shape_cast %18 : vector<1x8xf32> to vector<1x1x8xf32>
    %23 = vector.broadcast %22 : vector<1x1x8xf32> to vector<16x8x8xf32>
    %24 = arith.addf %21, %23 : vector<16x8x8xf32>
    %cst_15 = arith.constant 0.000000e+00 : f32
    %25 = vector.broadcast %cst_15 : f32 to vector<16x8x8xf32>
    %26 = arith.maximumf %24, %25 : vector<16x8x8xf32>
    %27 = vector.shape_cast %26 : vector<16x8x8xf32> to vector<128x8xf32>
    %28 = arith.truncf %27 : vector<128x8xf32> to vector<128x8xbf16>
    %c16 = arith.constant 16 : index
    %c0_16 = arith.constant 0 : index
    %29 = vector.load %arg3[%c16, %c0_16] : memref<32x8xbf16, #tpu.memory_space<vmem>>, vector<8x8xbf16>
    %cst_17 = arith.constant dense<0.000000e+00> : vector<128x8xf32>
    %30 = tpu.matmul %28, %29, %cst_17 {dimension_numbers = #tpu.dot_dimension_numbers<[1], [0], [0], [1], [0, 0, 1, 1], [], []>} : vector<128x8xbf16>, vector<8x8xbf16>, vector<128x8xf32> -> vector<128x8xf32>
    %c2 = arith.constant 2 : index
    %c0_18 = arith.constant 0 : index
    %31 = vector.load %arg4[%c2, %c0_18] : memref<8x8xf32, #tpu.memory_space<vmem>>, vector<1x8xf32>
    %32 = vector.shape_cast %30 : vector<128x8xf32> to vector<16x8x8xf32>
    %33 = arith.truncf %32 : vector<16x8x8xf32> to vector<16x8x8xbf16>
    "tpu.trace_start"() <{level = 10 : i32, message = "gnm,gmk->gnk"}> : () -> ()
    %cst_19 = arith.constant dense<0.000000e+00> : vector<16x8x8xf32>
    %34 = tpu.matmul %0, %33, %cst_19 {dimension_numbers = #tpu.dot_dimension_numbers<[2], [1], [1], [2], [0, 0, 0, 1, 1, 2], [0], [0]>} : vector<16x8x8xbf16>, vector<16x8x8xbf16>, vector<16x8x8xf32> -> vector<16x8x8xf32>
    "tpu.trace_stop"() : () -> ()
    %35 = vector.shape_cast %31 : vector<1x8xf32> to vector<1x1x8xf32>
    %36 = vector.broadcast %35 : vector<1x1x8xf32> to vector<16x8x8xf32>
    %37 = arith.addf %34, %36 : vector<16x8x8xf32>
    %cst_20 = arith.constant 0.000000e+00 : f32
    %38 = vector.broadcast %cst_20 : f32 to vector<16x8x8xf32>
    %39 = arith.maximumf %37, %38 : vector<16x8x8xf32>
    %40 = vector.shape_cast %39 : vector<16x8x8xf32> to vector<128x8xf32>
    %41 = arith.truncf %40 : vector<128x8xf32> to vector<128x8xbf16>
    %c24 = arith.constant 24 : index
    %c0_21 = arith.constant 0 : index
    %42 = vector.load %arg3[%c24, %c0_21] : memref<32x8xbf16, #tpu.memory_space<vmem>>, vector<1x8xbf16>
    %cst_22 = arith.constant dense<0.000000e+00> : vector<1x128xf32>
    %43 = tpu.matmul %42, %41, %cst_22 {dimension_numbers = #tpu.dot_dimension_numbers<[1], [1], [0], [0], [0, 0, 1, 0], [], []>} : vector<1x8xbf16>, vector<128x8xbf16>, vector<1x128xf32> -> vector<1x128xf32>
    %c3 = arith.constant 3 : index
    %c0_23 = arith.constant 0 : index
    %44 = vector.load %arg4[%c3, %c0_23] : memref<8x8xf32, #tpu.memory_space<vmem>>, vector<1x1xf32>
    %45 = vector.broadcast %44 : vector<1x1xf32> to vector<1x128xf32>
    %46 = arith.addf %43, %45 : vector<1x128xf32>
    %cst_24 = arith.constant dense<0.000000e+00> : vector<16x8xf32>
    %47 = vector.multi_reduction <add>, %39, %cst_24 [1] : vector<16x8x8xf32> to vector<16x8xf32>
    %cst_25 = arith.constant 1.250000e-01 : f32
    %48 = vector.broadcast %cst_25 : f32 to vector<16x8xf32>
    %49 = arith.mulf %47, %48 : vector<16x8xf32>
    %50 = vector.shape_cast %49 : vector<16x8xf32> to vector<16x1x8xf32>
    %51 = vector.shape_cast %50 : vector<16x1x8xf32> to vector<16x1x8xf32>
    %52 = vector.broadcast %51 : vector<16x1x8xf32> to vector<16x8x8xf32>
    %53 = vector.shape_cast %52 : vector<16x8x8xf32> to vector<128x8xf32>
    %c25 = arith.constant 25 : index
    %c0_26 = arith.constant 0 : index
    %54 = vector.load %arg3[%c25, %c0_26] : memref<32x8xbf16, #tpu.memory_space<vmem>>, vector<1x8xbf16>
    %55 = arith.truncf %53 : vector<128x8xf32> to vector<128x8xbf16>
    %cst_27 = arith.constant dense<0.000000e+00> : vector<1x128xf32>
    %56 = tpu.matmul %54, %55, %cst_27 {dimension_numbers = #tpu.dot_dimension_numbers<[1], [1], [0], [0], [0, 0, 1, 0], [], []>} : vector<1x8xbf16>, vector<128x8xbf16>, vector<1x128xf32> -> vector<1x128xf32>
    %c3_28 = arith.constant 3 : index
    %c1_29 = arith.constant 1 : index
    %57 = vector.load %arg4[%c3_28, %c1_29] : memref<8x8xf32, #tpu.memory_space<vmem>>, vector<1x1xf32>
    %58 = vector.broadcast %57 : vector<1x1xf32> to vector<1x128xf32>
    %59 = arith.addf %56, %58 : vector<1x128xf32>
    %c0_30 = arith.constant 0 : index
    %c0_31 = arith.constant 0 : index
    %c0_32 = arith.constant 0 : index
    %60 = vector.load %arg5[%c0_30, %c0_31, %c0_32] : memref<1x2x128xf32, #tpu.memory_space<vmem>>, vector<1x1x128xf32>
    %61 = vector.shape_cast %60 : vector<1x1x128xf32> to vector<1x128xf32>
    %62 = vector.shape_cast %46 : vector<1x128xf32> to vector<1x1x128xf32>
    tpu.vector_store %arg5[%c0_30, %c0_31, %c0_32], %62 {strides = array<i32>} : memref<1x2x128xf32, #tpu.memory_space<vmem>>, vector<1x1x128xf32>,
    %c0_33 = arith.constant 0 : index
    %c1_34 = arith.constant 1 : index
    %c0_35 = arith.constant 0 : index
    %63 = vector.load %arg5[%c0_33, %c1_34, %c0_35] : memref<1x2x128xf32, #tpu.memory_space<vmem>>, vector<1x1x128xf32>
    %64 = vector.shape_cast %63 : vector<1x1x128xf32> to vector<1x128xf32>
    %65 = vector.shape_cast %59 : vector<1x128xf32> to vector<1x1x128xf32>
    tpu.vector_store %arg5[%c0_33, %c1_34, %c0_35], %65 {strides = array<i32>} : memref<1x2x128xf32, #tpu.memory_space<vmem>>, vector<1x1x128xf32>,
    return
  }
  func.func @transform_0(%arg0: i32) -> (i32, i32, i32) {
    %c0_i32 = arith.constant 0 : i32
    %c0_i32_0 = arith.constant 0 : i32
    %c0_i32_1 = arith.constant 0 : i32
    return %arg0, %c0_i32, %c0_i32_0 : i32, i32, i32
  }
  func.func @transform_1(%arg0: i32) -> (i32, i32, i32) {
    %c0_i32 = arith.constant 0 : i32
    %c0_i32_0 = arith.constant 0 : i32
    %c0_i32_1 = arith.constant 0 : i32
    return %arg0, %c0_i32, %c0_i32_0 : i32, i32, i32
  }
  func.func @transform_2(%arg0: i32) -> (i32, i32) {
    %c0_i32 = arith.constant 0 : i32
    %c0_i32_0 = arith.constant 0 : i32
    %c0_i32_1 = arith.constant 0 : i32
    return %c0_i32, %c0_i32_0 : i32, i32
  }
  func.func @transform_3(%arg0: i32) -> (i32, i32) {
    %c0_i32 = arith.constant 0 : i32
    %c0_i32_0 = arith.constant 0 : i32
    %c0_i32_1 = arith.constant 0 : i32
    return %c0_i32, %c0_i32_0 : i32, i32
  }
  func.func @transform_4(%arg0: i32) -> (i32, i32, i32) {
    %c0_i32 = arith.constant 0 : i32
    %c0_i32_0 = arith.constant 0 : i32
    %c0_i32_1 = arith.constant 0 : i32
    return %arg0, %c0_i32, %c0_i32_0 : i32, i32, i32
  }
}

</mosaic_0001>

<llo_original>
// kernel: tpu_custom_call.1
$region0: #{tpu_custom_call.1}
  #allocation0 [shape = 'u32[]', space=smem, size = 0x4, offset = 0x4, fixed_abs, tag = 'smem constant byte address 0x4 - core index']
  #allocation1 [shape = 'u32[72,128]{1,0:T(1,128)}', space=vmem, size = 0x9000, scoped, tag = 'internal scratch']
  %s0 = inlined_call_operand.vmem [shape: bf16[32,8,8], index: 0, kind: input, shape index: {}]
  %s1 = inlined_call_operand.vmem [shape: bf16[32,8,4], index: 1, kind: input, shape index: {}]
  %s2 = inlined_call_operand.vmem [shape: bf16[32,8], index: 2, kind: input, shape index: {}]
  %s3 = inlined_call_operand.vmem [shape: f32[8,8], index: 3, kind: input, shape index: {}]
  %s4 = inlined_call_operand.hbm [shape: f32[2,2,128], index: 4, kind: output, shape index: {}]
  %s5 = sld [smem:[#allocation0]]
  $region49: #{tpu_custom_call.1} parent=0
    _
  %s7 = ssub.s32 1, %s5
  %s8 = scalar_select 0, %s7, %s5
  $region1: #{tpu_custom_call.1} parent=0
    #allocation2 [shape = 'u8[2048]{0}', space=vmem, size = 0x800, scoped, tag = 'output window, operand 0']
    #allocation3 [shape = 's32[2]{0}', space=sflag, size = 0x8, scoped, tag = 'scoped memory for tpu_custom_call.1']
    %9 = vsyncpa [#allocation3], 0
    %s10 = scalar_lea.sflag [#allocation3], 1
    %11 = vsyncpa %s10, 0
    loop: start=0, step=1, limit=4
    $region2: #{tpu_custom_call.1} parent=1 // loop_pre_header
      _
    $region3: #{tpu_custom_call.1} parent=1 // loop_header
      %s13 = sphi 0, %s17
      %p14 = scmp.ge.s32.totalorder %s13, 4
      %s23 = sphi 0, %s25
      %s26 = sphi 0, %s23
      %s27 = sphi 0, %s26
      %s43 = sphi 0, %s27
      %s49 = sphi 0, %s51
      %s52 = sphi 0, %s49
      %s53 = sphi 0, %s52
      %s69 = sphi 0, %s53
      %s73 = sphi 0, %s73
      %s75 = sphi 0, %s73
      %s76 = sphi 0, %s75
      %s90 = sphi 0, %s76
      %s94 = sphi 0, %s94
      %s96 = sphi 0, %s94
      %s97 = sphi 0, %s96
      %s111 = sphi 0, %s97
      %s117 = sphi 0, %s119
      %s120 = sphi 0, %s117
      %s121 = sphi 0, %s120
      %s137 = sphi 0, %s121
    $region4: #{tpu_custom_call.1} parent=1 // loop_header_branch
      %16 = sbr.rel (%p14) target = $region8
    $region5: #{tpu_custom_call.1} parent=1 // loop_body
      %s18 = ssub.s32 %s13, 1
      %s19 = ssub.s32 %s13, 2
      %s20 = sadd.s32 %s13, 1
      %s21 = ssub.s32 %s13, %s20
      %p22 = scmp.eq.s32.totalorder %s21, 0
      %s24 = sadd.s32 %s23, 1
      %s25 = scalar_select %p22, %s23, %s24
      %p28 = pneg %p22
      %p29 = scmp.eq.s32.totalorder %s13, 1
      %p30 = por %p28, %p29
      %p31 = scmp.ne.s32.totalorder %s23, %s26
      %p32 = scmp.eq.s32.totalorder %s13, 0
      %p33 = por %p31, %p32
      %p34 = scmp.ne.s32.totalorder %s23, %s26
      %p35 = scmp.eq.s32.totalorder %s18, 1
      %p36 = por %p34, %p35
      %p37 = scmp.ne.s32.totalorder %s26, %s27
      %p38 = scmp.eq.s32.totalorder %s18, 0
      %p39 = por %p37, %p38
      %p40 = scmp.ne.s32.totalorder %s26, %s27
      %p41 = scmp.eq.s32.totalorder %s19, 1
      %p42 = por %p40, %p41
      %p44 = scmp.ne.s32.totalorder %s27, %s43
      %p45 = scmp.eq.s32.totalorder %s19, 0
      %p46 = por %p44, %p45
      %s47 = ssub.s32 %s13, %s20
      %p48 = scmp.eq.s32.totalorder %s47, 0
      %s50 = sadd.s32 %s49, 1
      %s51 = scalar_select %p48, %s49, %s50
      %p54 = pneg %p48
      %p55 = scmp.eq.s32.totalorder %s13, 1
      %p56 = por %p54, %p55
      %p57 = scmp.ne.s32.totalorder %s49, %s52
      %p58 = scmp.eq.s32.totalorder %s13, 0
      %p59 = por %p57, %p58
      %p60 = scmp.ne.s32.totalorder %s49, %s52
      %p61 = scmp.eq.s32.totalorder %s18, 1
      %p62 = por %p60, %p61
      %p63 = scmp.ne.s32.totalorder %s52, %s53
      %p64 = scmp.eq.s32.totalorder %s18, 0
      %p65 = por %p63, %p64
      %p66 = scmp.ne.s32.totalorder %s52, %s53
      %p67 = scmp.eq.s32.totalorder %s19, 1
      %p68 = por %p66, %p67
      %p70 = scmp.ne.s32.totalorder %s53, %s69
      %p71 = scmp.eq.s32.totalorder %s19, 0
      %p72 = por %p70, %p71
      %s74 = sadd.s32 %s73, 1
      %p77 = scmp.eq.s32.totalorder %s13, 1
      %p78 = scmp.ne.s32.totalorder %s73, %s75
      %p79 = scmp.eq.s32.totalorder %s13, 0
      %p80 = por %p78, %p79
      %p81 = scmp.ne.s32.totalorder %s73, %s75
      %p82 = scmp.eq.s32.totalorder %s18, 1
      %p83 = por %p81, %p82
      %p84 = scmp.ne.s32.totalorder %s75, %s76
      %p85 = scmp.eq.s32.totalorder %s18, 0
      %p86 = por %p84, %p85
      %p87 = scmp.ne.s32.totalorder %s75, %s76
      %p88 = scmp.eq.s32.totalorder %s19, 1
      %p89 = por %p87, %p88
      %p91 = scmp.ne.s32.totalorder %s76, %s90
      %p92 = scmp.eq.s32.totalorder %s19, 0
      %p93 = por %p91, %p92
      %s95 = sadd.s32 %s94, 1
      %p98 = scmp.eq.s32.totalorder %s13, 1
      %p99 = scmp.ne.s32.totalorder %s94, %s96
      %p100 = scmp.eq.s32.totalorder %s13, 0
      %p101 = por %p99, %p100
      %p102 = scmp.ne.s32.totalorder %s94, %s96
      %p103 = scmp.eq.s32.totalorder %s18, 1
      %p104 = por %p102, %p103
      %p105 = scmp.ne.s32.totalorder %s96, %s97
      %p106 = scmp.eq.s32.totalorder %s18, 0
      %p107 = por %p105, %p106
      %p108 = scmp.ne.s32.totalorder %s96, %s97
      %p109 = scmp.eq.s32.totalorder %s19, 1
      %p110 = por %p108, %p109
      %p112 = scmp.ne.s32.totalorder %s97, %s111
      %p113 = scmp.eq.s32.totalorder %s19, 0
      %p114 = por %p112, %p113
      %s115 = ssub.s32 %s13, %s20
      %p116 = scmp.eq.s32.totalorder %s115, 0
      %s118 = sadd.s32 %s117, 1
      %s119 = scalar_select %p116, %s117, %s118
      %p122 = pneg %p116
      %p123 = scmp.eq.s32.totalorder %s13, 1
      %p124 = por %p122, %p123
      %p125 = scmp.ne.s32.totalorder %s117, %s120
      %p126 = scmp.eq.s32.totalorder %s13, 0
      %p127 = por %p125, %p126
      %p128 = scmp.ne.s32.totalorder %s117, %s120
      %p129 = scmp.eq.s32.totalorder %s18, 1
      %p130 = por %p128, %p129
      %p131 = scmp.ne.s32.totalorder %s120, %s121
      %p132 = scmp.eq.s32.totalorder %s18, 0
      %p133 = por %p131, %p132
      %p134 = scmp.ne.s32.totalorder %s120, %s121
      %p135 = scmp.eq.s32.totalorder %s19, 1
      %p136 = por %p134, %p135
      %p138 = scmp.ne.s32.totalorder %s121, %s137
      %p139 = scmp.eq.s32.totalorder %s19, 0
      %p140 = por %p138, %p139
      %p141 = scmp.le.s32.totalorder 1, %s13
      %p142 = scmp.lt.s32.totalorder %s13, 3
      %p143 = pnand %p141, %p142
      %p144 = pneg %p143
      // Predicated region
      $region9: #{tpu_custom_call.1} parent=5 // pred_check
        _
      $region10: #{tpu_custom_call.1} parent=5 // pred_check_branch
        %146 = sbr.rel (%p143) target = $region12
      $region11: #{tpu_custom_call.1} parent=5 // pred_region
        %s147 = ssub.s32 %s13, 1
        // Predicated region
        $region13: #{tpu_custom_call.1} parent=11 // pred_check
          %p148 = pneg %p86
        $region14: #{tpu_custom_call.1} parent=11 // pred_check_branch
          %150 = sbr.rel (%p148) target = $region16
        $region15: #{tpu_custom_call.1} parent=11 // pred_region
          _
        $region16: #{tpu_custom_call.1} parent=11 // pred_fallthru
          _
        // Predicated region
        $region17: #{tpu_custom_call.1} parent=11 // pred_check
          %p151 = pneg %p107
        $region18: #{tpu_custom_call.1} parent=11 // pred_check_branch
          %153 = sbr.rel (%p151) target = $region20
        $region19: #{tpu_custom_call.1} parent=11 // pred_region
          _
        $region20: #{tpu_custom_call.1} parent=11 // pred_fallthru
          _
      $region12: #{tpu_custom_call.1} parent=5 // pred_fallthru
        _
      %p154 = scmp.lt.s32.totalorder %s13, 2
      // Predicated region
      $region21: #{tpu_custom_call.1} parent=5 // pred_check
        %p155 = pneg %p154
      $region22: #{tpu_custom_call.1} parent=5 // pred_check_branch
        %157 = sbr.rel (%p155) target = $region24
      $region23: #{tpu_custom_call.1} parent=5 // pred_region
        // Predicated region
        $region25: #{tpu_custom_call.1} parent=23 // pred_check
          %p158 = pneg %p33
        $region26: #{tpu_custom_call.1} parent=23 // pred_check_branch
          %160 = sbr.rel (%p158) target = $region28
        $region27: #{tpu_custom_call.1} parent=23 // pred_region
          %s161 = smul.u32 16, %s13
          %p162 = scmp.lt.s32.totalorder %s161, 31
          %s163 = scalar_select %p162, %s161, 31
          %s164 = smul.addr %s163, 4
          %s165 = scalar_lea.vmem %s0, %s164
          %s166 = smul.u32 16, %s13
        $region28: #{tpu_custom_call.1} parent=23 // pred_fallthru
          _
        // Predicated region
        $region29: #{tpu_custom_call.1} parent=23 // pred_check
          %p167 = pneg %p59
        $region30: #{tpu_custom_call.1} parent=23 // pred_check_branch
          %169 = sbr.rel (%p167) target = $region32
        $region31: #{tpu_custom_call.1} parent=23 // pred_region
          %s170 = smul.u32 16, %s13
          %p171 = scmp.lt.s32.totalorder %s170, 31
          %s172 = scalar_select %p171, %s170, 31
          %s173 = smul.addr %s172, 4
          %s174 = scalar_lea.vmem %s1, %s173
          %s175 = smul.u32 16, %s13
        $region32: #{tpu_custom_call.1} parent=23 // pred_fallthru
          _
      $region24: #{tpu_custom_call.1} parent=5 // pred_fallthru
        _
      %p176 = scmp.le.s32.totalorder 1, %s13
      %p177 = scmp.lt.s32.totalorder %s13, 3
      %p178 = pnand %p176, %p177
      %p179 = pneg %p178
      // Predicated region
      $region33: #{tpu_custom_call.1} parent=5 // pred_check
        _
      $region34: #{tpu_custom_call.1} parent=5 // pred_check_branch
        %181 = sbr.rel (%p178) target = $region36
      $region35: #{tpu_custom_call.1} parent=5 // pred_region
        %s182 = ssub.s32 %s13, 1
        %s183 = smul.u32 16, %s18
        %p184 = scmp.lt.s32.totalorder %s183, 31
        %s185 = scalar_select %p184, %s183, 31
        %s186 = smul.addr %s185, 4
        %s187 = scalar_lea.vmem %s0, %s186
        %p188 = pneg %p39
        %p189 = pneg %p36
        %s190 = smul.u32 16, %s18
        %p191 = scmp.lt.s32.totalorder %s190, 31
        %s192 = scalar_select %p191, %s190, 31
        %s193 = smul.addr %s192, 4
        %s194 = scalar_lea.vmem %s1, %s193
        %p195 = pneg %p65
        %p196 = pneg %p62
        %p197 = pneg %p86
        %p198 = pneg %p83
        %p199 = pneg %p107
        %p200 = pneg %p104
        %p201 = pneg %p133
        %p202 = pneg %p130
        %s203 = sand.u32 %s120, 1
        %s204 = scalar_lea.sflag [#allocation3], %s203
        %s205 = sand.u32 %s120, 1
        %s206 = smul.addr %s205, 2
        %s207 = scalar_lea.vmem [#allocation2], %s206
        %s208 = smul.u32 16, %s18
        %p209 = scmp.lt.s32.totalorder %s208, 31
        %s210 = scalar_select %p209, %s208, 31
        %s211 = smul.addr %s210, 4
        %s212 = scalar_lea.vmem %s0, %s211
        %s213 = smul.u32 16, %s18
        %s214 = smul.u32 16, %s18
        %p215 = scmp.lt.s32.totalorder %s214, 31
        %s216 = scalar_select %p215, %s214, 31
        %s217 = smul.addr %s216, 4
        %s218 = scalar_lea.vmem %s1, %s217
        %s219 = smul.u32 16, %s18
        %v221 = vld [vmem:[%s212] sm:$0xf]
        %v222 = vld [vmem:[%s212 + $0x4] sm:$0xf]
        %v223 = vld [vmem:[%s212 + $0x8] sm:$0xf]
        %v224 = vld [vmem:[%s212 + $0xc] sm:$0xf]
        %v225 = vld [vmem:[%s212 + $0x10] sm:$0xf]
        %v226 = vld [vmem:[%s212 + $0x14] sm:$0xf]
        %v227 = vld [vmem:[%s212 + $0x18] sm:$0xf]
        %v228 = vld [vmem:[%s212 + $0x1c] sm:$0xf]
        %v229 = vld [vmem:[%s212 + $0x20] sm:$0xf]
        %v230 = vld [vmem:[%s212 + $0x24] sm:$0xf]
        %v231 = vld [vmem:[%s212 + $0x28] sm:$0xf]
        %v232 = vld [vmem:[%s212 + $0x2c] sm:$0xf]
        %v233 = vld [vmem:[%s212 + $0x30] sm:$0xf]
        %v234 = vld [vmem:[%s212 + $0x34] sm:$0xf]
        %v235 = vld [vmem:[%s212 + $0x38] sm:$0xf]
        %v236 = vld [vmem:[%s212 + $0x3c] sm:$0xf]
        %v237 = vld [vmem:[%s218] sm:$0xf]
        %v238 = vld [vmem:[%s218 + $0x4] sm:$0xf]
        %v239 = vld [vmem:[%s218 + $0x8] sm:$0xf]
        %v240 = vld [vmem:[%s218 + $0xc] sm:$0xf]
        %v241 = vld [vmem:[%s218 + $0x10] sm:$0xf]
        %v242 = vld [vmem:[%s218 + $0x14] sm:$0xf]
        %v243 = vld [vmem:[%s218 + $0x18] sm:$0xf]
        %v244 = vld [vmem:[%s218 + $0x1c] sm:$0xf]
        %v245 = vld [vmem:[%s218 + $0x20] sm:$0xf]
        %v246 = vld [vmem:[%s218 + $0x24] sm:$0xf]
        %v247 = vld [vmem:[%s218 + $0x28] sm:$0xf]
        %v248 = vld [vmem:[%s218 + $0x2c] sm:$0xf]
        %v249 = vld [vmem:[%s218 + $0x30] sm:$0xf]
        %v250 = vld [vmem:[%s218 + $0x34] sm:$0xf]
        %v251 = vld [vmem:[%s218 + $0x38] sm:$0xf]
        %v252 = vld [vmem:[%s218 + $0x3c] sm:$0xf]
        %v253 = vld [vmem:[%s2] sm:$0x3]
        %v270 = vunpack.c.l.b16 %v237
        %v271 = vunpack.c.l.b16 %v238
        %v272 = vunpack.c.l.b16 %v239
        %v273 = vunpack.c.l.b16 %v240
        %v274 = vunpack.c.l.b16 %v241
        %v275 = vunpack.c.l.b16 %v242
        %v276 = vunpack.c.l.b16 %v243
        %v277 = vunpack.c.l.b16 %v244
        %v278 = vunpack.c.l.b16 %v245
        %v279 = vunpack.c.l.b16 %v246
        %v280 = vunpack.c.l.b16 %v247
        %v281 = vunpack.c.l.b16 %v248
        %v282 = vunpack.c.l.b16 %v249
        %v283 = vunpack.c.l.b16 %v250
        %v284 = vunpack.c.l.b16 %v251
        %v285 = vunpack.c.l.b16 %v252
        %v286 = vpack.c.b16 %v271, %v270
        %v287 = vpack.c.b16 %v273, %v272
        %v288 = vpack.c.b16 %v275, %v274
        %v289 = vpack.c.b16 %v277, %v276
        %v290 = vpack.c.b16 %v279, %v278
        %v291 = vpack.c.b16 %v281, %v280
        %v292 = vpack.c.b16 %v283, %v282
        %v293 = vpack.c.b16 %v285, %v284
        %vm294 = vcmask 31744
        %v296 = vsel %vm294, %v286, 0
        %v299 = vsel %vm294, %v287, 0
        %v302 = vsel %vm294, %v288, 0
        %v305 = vsel %vm294, %v289, 0
        %v308 = vsel %vm294, %v290, 0
        %v311 = vsel %vm294, %v291, 0
        %v314 = vsel %vm294, %v292, 0
        %v317 = vsel %vm294, %v293, 0
        %vm319 = vcmask 1041408
        %v321 = vsel %vm319, %v253, 0
        %323 = vmatpush.bf16.msra.mxu0 0
        %324 = vmatpush.bf16.msra.mxu0 0
        %325 = vmatpush.bf16.msra.mxu0 0
        %326 = vmatpush.bf16.msra.mxu0 0
        %327 = vmatpush.bf16.msra.mxu0 0
        %328 = vmatpush.bf16.msra.mxu0 0
        %329 = vmatpush.bf16.msra.mxu0 0
        %330 = vmatpush.bf16.msra.mxu0 %v321
        %331 = vmatmul.bf16.gmra.mxu0 %v296
        %v332 = vpop.f32.mrf.mxu0
        %v333 = vadd.f32 0.0, %v332
        %v334 = vpop.f32.mrf.mxu0
        %v335 = vadd.f32 0.0, %v334
        %336 = vmatmul.bf16.gmra.mxu0 %v299
        %v337 = vpop.f32.mrf.mxu0
        %v338 = vadd.f32 0.0, %v337
        %v339 = vpop.f32.mrf.mxu0
        %v340 = vadd.f32 0.0, %v339
        %341 = vmatmul.bf16.gmra.mxu0 %v302
        %v342 = vpop.f32.mrf.mxu0
        %v343 = vadd.f32 0.0, %v342
        %v344 = vpop.f32.mrf.mxu0
        %v345 = vadd.f32 0.0, %v344
        %346 = vmatmul.bf16.gmra.mxu0 %v305
        %v347 = vpop.f32.mrf.mxu0
        %v348 = vadd.f32 0.0, %v347
        %v349 = vpop.f32.mrf.mxu0
        %v350 = vadd.f32 0.0, %v349
        %351 = vmatmul.bf16.gmra.mxu0 %v308
        %v352 = vpop.f32.mrf.mxu0
        %v353 = vadd.f32 0.0, %v352
        %v354 = vpop.f32.mrf.mxu0
        %v355 = vadd.f32 0.0, %v354
        %356 = vmatmul.bf16.gmra.mxu0 %v311
        %v357 = vpop.f32.mrf.mxu0
        %v358 = vadd.f32 0.0, %v357
        %v359 = vpop.f32.mrf.mxu0
        %v360 = vadd.f32 0.0, %v359
        %361 = vmatmul.bf16.gmra.mxu0 %v314
        %v362 = vpop.f32.mrf.mxu0
        %v363 = vadd.f32 0.0, %v362
        %v364 = vpop.f32.mrf.mxu0
        %v365 = vadd.f32 0.0, %v364
        %366 = vmatmul.bf16.gmra.mxu0 %v317
        %v367 = vpop.f32.mrf.mxu0
        %v368 = vadd.f32 0.0, %v367
        %v369 = vpop.f32.mrf.mxu0
        %v370 = vadd.f32 0.0, %v369
        %371 = vdwg.mxu0
        %v372 = vld [vmem:[%s3] sm:$0x1]
        %v373 = vpack.c.bf16 %v333, %v333
        %v374 = vpack.c.bf16 %v335, %v335
        %v375 = vpack.c.bf16 %v338, %v338
        %v376 = vpack.c.bf16 %v340, %v340
        %v377 = vpack.c.bf16 %v343, %v343
        %v378 = vpack.c.bf16 %v345, %v345
        %v379 = vpack.c.bf16 %v348, %v348
        %v380 = vpack.c.bf16 %v350, %v350
        %v381 = vpack.c.bf16 %v353, %v353
        %v382 = vpack.c.bf16 %v355, %v355
        %v383 = vpack.c.bf16 %v358, %v358
        %v384 = vpack.c.bf16 %v360, %v360
        %v385 = vpack.c.bf16 %v363, %v363
        %v386 = vpack.c.bf16 %v365, %v365
        %v387 = vpack.c.bf16 %v368, %v368
        %v388 = vpack.c.bf16 %v370, %v370
        %v389 = vperm.slane %v372, 0
        %vm390 = vcmask 64512
        %v392 = vsel %vm390, %v221, 0
        %vm394 = vcmask 1043456
        %v396 = vsel %vm394, %v373, 0
        %398 = vmatpush.bf16.msra.mxu0 0
        %399 = vmatpush.bf16.msra.mxu0 0
        %400 = vmatpush.bf16.msra.mxu0 0
        %401 = vmatpush.bf16.msra.mxu0 0
        %402 = vmatpush.bf16.msra.mxu0 0
        %403 = vmatpush.bf16.msra.mxu0 0
        %404 = vmatpush.bf16.msra.mxu0 0
        %405 = vmatpush.bf16.msra.mxu0 %v396
        %406 = vmatmul.bf16.gmra.mxu0 %v392
        %v407 = vpop.f32.mrf.mxu0
        %v408 = vadd.f32 %v389, %v407
        %v409 = vpop.f32.mrf.mxu0
        %410 = vdwg.mxu0
        %v412 = vsel %vm390, %v222, 0
        %v415 = vsel %vm394, %v374, 0
        %417 = vmatpush.bf16.msra.mxu0 0
        %418 = vmatpush.bf16.msra.mxu0 0
        %419 = vmatpush.bf16.msra.mxu0 0
        %420 = vmatpush.bf16.msra.mxu0 0
        %421 = vmatpush.bf16.msra.mxu0 0
        %422 = vmatpush.bf16.msra.mxu0 0
        %423 = vmatpush.bf16.msra.mxu0 0
        %424 = vmatpush.bf16.msra.mxu0 %v415
        %425 = vmatmul.bf16.gmra.mxu0 %v412
        %v426 = vpop.f32.mrf.mxu0
        %v427 = vadd.f32 %v389, %v426
        %v428 = vpop.f32.mrf.mxu0
        %429 = vdwg.mxu0
        %v431 = vsel %vm390, %v223, 0
        %v434 = vsel %vm394, %v375, 0
        %436 = vmatpush.bf16.msra.mxu0 0
        %437 = vmatpush.bf16.msra.mxu0 0
        %438 = vmatpush.bf16.msra.mxu0 0
        %439 = vmatpush.bf16.msra.mxu0 0
        %440 = vmatpush.bf16.msra.mxu0 0
        %441 = vmatpush.bf16.msra.mxu0 0
        %442 = vmatpush.bf16.msra.mxu0 0
        %443 = vmatpush.bf16.msra.mxu0 %v434
        %444 = vmatmul.bf16.gmra.mxu0 %v431
        %v445 = vpop.f32.mrf.mxu0
        %v446 = vadd.f32 %v389, %v445
        %v447 = vpop.f32.mrf.mxu0
        %448 = vdwg.mxu0
        %v450 = vsel %vm390, %v224, 0
        %v453 = vsel %vm394, %v376, 0
        %455 = vmatpush.bf16.msra.mxu0 0
        %456 = vmatpush.bf16.msra.mxu0 0
        %457 = vmatpush.bf16.msra.mxu0 0
        %458 = vmatpush.bf16.msra.mxu0 0
        %459 = vmatpush.bf16.msra.mxu0 0
        %460 = vmatpush.bf16.msra.mxu0 0
        %461 = vmatpush.bf16.msra.mxu0 0
        %462 = vmatpush.bf16.msra.mxu0 %v453
        %463 = vmatmul.bf16.gmra.mxu0 %v450
        %v464 = vpop.f32.mrf.mxu0
        %v465 = vadd.f32 %v389, %v464
        %v466 = vpop.f32.mrf.mxu0
        %467 = vdwg.mxu0
        %v469 = vsel %vm390, %v225, 0
        %v472 = vsel %vm394, %v377, 0
        %474 = vmatpush.bf16.msra.mxu0 0
        %475 = vmatpush.bf16.msra.mxu0 0
        %476 = vmatpush.bf16.msra.mxu0 0
        %477 = vmatpush.bf16.msra.mxu0 0
        %478 = vmatpush.bf16.msra.mxu0 0
        %479 = vmatpush.bf16.msra.mxu0 0
        %480 = vmatpush.bf16.msra.mxu0 0
        %481 = vmatpush.bf16.msra.mxu0 %v472
        %482 = vmatmul.bf16.gmra.mxu0 %v469
        %v483 = vpop.f32.mrf.mxu0
        %v484 = vadd.f32 %v389, %v483
        %v485 = vpop.f32.mrf.mxu0
        %486 = vdwg.mxu0
        %v488 = vsel %vm390, %v226, 0
        %v491 = vsel %vm394, %v378, 0
        %493 = vmatpush.bf16.msra.mxu0 0
        %494 = vmatpush.bf16.msra.mxu0 0
        %495 = vmatpush.bf16.msra.mxu0 0
        %496 = vmatpush.bf16.msra.mxu0 0
        %497 = vmatpush.bf16.msra.mxu0 0
        %498 = vmatpush.bf16.msra.mxu0 0
        %499 = vmatpush.bf16.msra.mxu0 0
        %500 = vmatpush.bf16.msra.mxu0 %v491
        %501 = vmatmul.bf16.gmra.mxu0 %v488
        %v502 = vpop.f32.mrf.mxu0
        %v503 = vadd.f32 %v389, %v502
        %v504 = vpop.f32.mrf.mxu0
        %505 = vdwg.mxu0
        %v507 = vsel %vm390, %v227, 0
        %v510 = vsel %vm394, %v379, 0
        %512 = vmatpush.bf16.msra.mxu0 0
        %513 = vmatpush.bf16.msra.mxu0 0
        %514 = vmatpush.bf16.msra.mxu0 0
        %515 = vmatpush.bf16.msra.mxu0 0
        %516 = vmatpush.bf16.msra.mxu0 0
        %517 = vmatpush.bf16.msra.mxu0 0
        %518 = vmatpush.bf16.msra.mxu0 0
        %519 = vmatpush.bf16.msra.mxu0 %v510
        %520 = vmatmul.bf16.gmra.mxu0 %v507
        %v521 = vpop.f32.mrf.mxu0
        %v522 = vadd.f32 %v389, %v521
        %v523 = vpop.f32.mrf.mxu0
        %524 = vdwg.mxu0
        %v526 = vsel %vm390, %v228, 0
        %v529 = vsel %vm394, %v380, 0
        %531 = vmatpush.bf16.msra.mxu0 0
        %532 = vmatpush.bf16.msra.mxu0 0
        %533 = vmatpush.bf16.msra.mxu0 0
        %534 = vmatpush.bf16.msra.mxu0 0
        %535 = vmatpush.bf16.msra.mxu0 0
        %536 = vmatpush.bf16.msra.mxu0 0
        %537 = vmatpush.bf16.msra.mxu0 0
        %538 = vmatpush.bf16.msra.mxu0 %v529
        %539 = vmatmul.bf16.gmra.mxu0 %v526
        %v540 = vpop.f32.mrf.mxu0
        %v541 = vadd.f32 %v389, %v540
        %v542 = vpop.f32.mrf.mxu0
        %543 = vdwg.mxu0
        %v545 = vsel %vm390, %v229, 0
        %v548 = vsel %vm394, %v381, 0
        %550 = vmatpush.bf16.msra.mxu0 0
        %551 = vmatpush.bf16.msra.mxu0 0
        %552 = vmatpush.bf16.msra.mxu0 0
        %553 = vmatpush.bf16.msra.mxu0 0
        %554 = vmatpush.bf16.msra.mxu0 0
        %555 = vmatpush.bf16.msra.mxu0 0
        %556 = vmatpush.bf16.msra.mxu0 0
        %557 = vmatpush.bf16.msra.mxu0 %v548
        %558 = vmatmul.bf16.gmra.mxu0 %v545
        %v559 = vpop.f32.mrf.mxu0
        %v560 = vadd.f32 %v389, %v559
        %v561 = vpop.f32.mrf.mxu0
        %562 = vdwg.mxu0
        %v564 = vsel %vm390, %v230, 0
        %v567 = vsel %vm394, %v382, 0
        %569 = vmatpush.bf16.msra.mxu0 0
        %570 = vmatpush.bf16.msra.mxu0 0
        %571 = vmatpush.bf16.msra.mxu0 0
        %572 = vmatpush.bf16.msra.mxu0 0
        %573 = vmatpush.bf16.msra.mxu0 0
        %574 = vmatpush.bf16.msra.mxu0 0
        %575 = vmatpush.bf16.msra.mxu0 0
        %576 = vmatpush.bf16.msra.mxu0 %v567
        %577 = vmatmul.bf16.gmra.mxu0 %v564
        %v578 = vpop.f32.mrf.mxu0
        %v579 = vadd.f32 %v389, %v578
        %v580 = vpop.f32.mrf.mxu0
        %581 = vdwg.mxu0
        %v583 = vsel %vm390, %v231, 0
        %v586 = vsel %vm394, %v383, 0
        %588 = vmatpush.bf16.msra.mxu0 0
        %589 = vmatpush.bf16.msra.mxu0 0
        %590 = vmatpush.bf16.msra.mxu0 0
        %591 = vmatpush.bf16.msra.mxu0 0
        %592 = vmatpush.bf16.msra.mxu0 0
        %593 = vmatpush.bf16.msra.mxu0 0
        %594 = vmatpush.bf16.msra.mxu0 0
        %595 = vmatpush.bf16.msra.mxu0 %v586
        %596 = vmatmul.bf16.gmra.mxu0 %v583
        %v597 = vpop.f32.mrf.mxu0
        %v598 = vadd.f32 %v389, %v597
        %v599 = vpop.f32.mrf.mxu0
        %600 = vdwg.mxu0
        %v602 = vsel %vm390, %v232, 0
        %v605 = vsel %vm394, %v384, 0
        %607 = vmatpush.bf16.msra.mxu0 0
        %608 = vmatpush.bf16.msra.mxu0 0
        %609 = vmatpush.bf16.msra.mxu0 0
        %610 = vmatpush.bf16.msra.mxu0 0
        %611 = vmatpush.bf16.msra.mxu0 0
        %612 = vmatpush.bf16.msra.mxu0 0
        %613 = vmatpush.bf16.msra.mxu0 0
        %614 = vmatpush.bf16.msra.mxu0 %v605
        %615 = vmatmul.bf16.gmra.mxu0 %v602
        %v616 = vpop.f32.mrf.mxu0
        %v617 = vadd.f32 %v389, %v616
        %v618 = vpop.f32.mrf.mxu0
        %619 = vdwg.mxu0
        %v621 = vsel %vm390, %v233, 0
        %v624 = vsel %vm394, %v385, 0
        %626 = vmatpush.bf16.msra.mxu0 0
        %627 = vmatpush.bf16.msra.mxu0 0
        %628 = vmatpush.bf16.msra.mxu0 0
        %629 = vmatpush.bf16.msra.mxu0 0
        %630 = vmatpush.bf16.msra.mxu0 0
        %631 = vmatpush.bf16.msra.mxu0 0
        %632 = vmatpush.bf16.msra.mxu0 0
        %633 = vmatpush.bf16.msra.mxu0 %v624
        %634 = vmatmul.bf16.gmra.mxu0 %v621
        %v635 = vpop.f32.mrf.mxu0
        %v636 = vadd.f32 %v389, %v635
        %v637 = vpop.f32.mrf.mxu0
        %638 = vdwg.mxu0
        %v640 = vsel %vm390, %v234, 0
        %v643 = vsel %vm394, %v386, 0
        %645 = vmatpush.bf16.msra.mxu0 0
        %646 = vmatpush.bf16.msra.mxu0 0
        %647 = vmatpush.bf16.msra.mxu0 0
        %648 = vmatpush.bf16.msra.mxu0 0
        %649 = vmatpush.bf16.msra.mxu0 0
        %650 = vmatpush.bf16.msra.mxu0 0
        %651 = vmatpush.bf16.msra.mxu0 0
        %652 = vmatpush.bf16.msra.mxu0 %v643
        %653 = vmatmul.bf16.gmra.mxu0 %v640
        %v654 = vpop.f32.mrf.mxu0
        %v655 = vadd.f32 %v389, %v654
        %v656 = vpop.f32.mrf.mxu0
        %657 = vdwg.mxu0
        %v659 = vsel %vm390, %v235, 0
        %v662 = vsel %vm394, %v387, 0
        %664 = vmatpush.bf16.msra.mxu0 0
        %665 = vmatpush.bf16.msra.mxu0 0
        %666 = vmatpush.bf16.msra.mxu0 0
        %667 = vmatpush.bf16.msra.mxu0 0
        %668 = vmatpush.bf16.msra.mxu0 0
        %669 = vmatpush.bf16.msra.mxu0 0
        %670 = vmatpush.bf16.msra.mxu0 0
        %671 = vmatpush.bf16.msra.mxu0 %v662
        %672 = vmatmul.bf16.gmra.mxu0 %v659
        %v673 = vpop.f32.mrf.mxu0
        %v674 = vadd.f32 %v389, %v673
        %v675 = vpop.f32.mrf.mxu0
        %676 = vdwg.mxu0
        %v678 = vsel %vm390, %v236, 0
        %v681 = vsel %vm394, %v388, 0
        %683 = vmatpush.bf16.msra.mxu0 0
        %684 = vmatpush.bf16.msra.mxu0 0
        %685 = vmatpush.bf16.msra.mxu0 0
        %686 = vmatpush.bf16.msra.mxu0 0
        %687 = vmatpush.bf16.msra.mxu0 0
        %688 = vmatpush.bf16.msra.mxu0 0
        %689 = vmatpush.bf16.msra.mxu0 0
        %690 = vmatpush.bf16.msra.mxu0 %v681
        %691 = vmatmul.bf16.gmra.mxu0 %v678
        %v692 = vpop.f32.mrf.mxu0
        %v693 = vadd.f32 %v389, %v692
        %v694 = vpop.f32.mrf.mxu0
        %695 = vdwg.mxu0
        %v696 = vmax.f32 %v408, 0.0
        %v697 = vmax.f32 %v427, 0.0
        %v698 = vmax.f32 %v446, 0.0
        %v699 = vmax.f32 %v465, 0.0
        %v700 = vmax.f32 %v484, 0.0
        %v701 = vmax.f32 %v503, 0.0
        %v702 = vmax.f32 %v522, 0.0
        %v703 = vmax.f32 %v541, 0.0
        %v704 = vmax.f32 %v560, 0.0
        %v705 = vmax.f32 %v579, 0.0
        %v706 = vmax.f32 %v598, 0.0
        %v707 = vmax.f32 %v617, 0.0
        %v708 = vmax.f32 %v636, 0.0
        %v709 = vmax.f32 %v655, 0.0
        %v710 = vmax.f32 %v674, 0.0
        %v711 = vmax.f32 %v693, 0.0
        %v712 = vpack.c.bf16 %v697, %v696
        %v713 = vpack.c.bf16 %v699, %v698
        %v714 = vpack.c.bf16 %v701, %v700
        %v715 = vpack.c.bf16 %v703, %v702
        %v716 = vpack.c.bf16 %v705, %v704
        %v717 = vpack.c.bf16 %v707, %v706
        %v718 = vpack.c.bf16 %v709, %v708
        %v719 = vpack.c.bf16 %v711, %v710
        %v720 = vld [vmem:[%s2 + $0x4] sm:$0xf]
        %v722 = vsel %vm390, %v712, 0
        %v725 = vsel %vm390, %v713, 0
        %v728 = vsel %vm390, %v714, 0
        %v731 = vsel %vm390, %v715, 0
        %v734 = vsel %vm390, %v716, 0
        %v737 = vsel %vm390, %v717, 0
        %v740 = vsel %vm390, %v718, 0
        %v743 = vsel %vm390, %v719, 0
        %v746 = vsel %vm394, %v720, 0
        %748 = vmatpush.bf16.msra.mxu0 0
        %749 = vmatpush.bf16.msra.mxu0 0
        %750 = vmatpush.bf16.msra.mxu0 0
        %751 = vmatpush.bf16.msra.mxu0 0
        %752 = vmatpush.bf16.msra.mxu0 0
        %753 = vmatpush.bf16.msra.mxu0 0
        %754 = vmatpush.bf16.msra.mxu0 0
        %755 = vmatpush.bf16.msra.mxu0 %v746
        %756 = vmatmul.bf16.gmra.mxu0 %v722
        %v757 = vpop.f32.mrf.mxu0
        %v758 = vadd.f32 0.0, %v757
        %v759 = vpop.f32.mrf.mxu0
        %v760 = vadd.f32 0.0, %v759
        %761 = vmatmul.bf16.gmra.mxu0 %v725
        %v762 = vpop.f32.mrf.mxu0
        %v763 = vadd.f32 0.0, %v762
        %v764 = vpop.f32.mrf.mxu0
        %v765 = vadd.f32 0.0, %v764
        %766 = vmatmul.bf16.gmra.mxu0 %v728
        %v767 = vpop.f32.mrf.mxu0
        %v768 = vadd.f32 0.0, %v767
        %v769 = vpop.f32.mrf.mxu0
        %v770 = vadd.f32 0.0, %v769
        %771 = vmatmul.bf16.gmra.mxu0 %v731
        %v772 = vpop.f32.mrf.mxu0
        %v773 = vadd.f32 0.0, %v772
        %v774 = vpop.f32.mrf.mxu0
        %v775 = vadd.f32 0.0, %v774
        %776 = vmatmul.bf16.gmra.mxu0 %v734
        %v777 = vpop.f32.mrf.mxu0
        %v778 = vadd.f32 0.0, %v777
        %v779 = vpop.f32.mrf.mxu0
        %v780 = vadd.f32 0.0, %v779
        %781 = vmatmul.bf16.gmra.mxu0 %v737
        %v782 = vpop.f32.mrf.mxu0
        %v783 = vadd.f32 0.0, %v782
        %v784 = vpop.f32.mrf.mxu0
        %v785 = vadd.f32 0.0, %v784
        %786 = vmatmul.bf16.gmra.mxu0 %v740
        %v787 = vpop.f32.mrf.mxu0
        %v788 = vadd.f32 0.0, %v787
        %v789 = vpop.f32.mrf.mxu0
        %v790 = vadd.f32 0.0, %v789
        %791 = vmatmul.bf16.gmra.mxu0 %v743
        %v792 = vpop.f32.mrf.mxu0
        %v793 = vadd.f32 0.0, %v792
        %v794 = vpop.f32.mrf.mxu0
        %v795 = vadd.f32 0.0, %v794
        %796 = vdwg.mxu0
        %v797 = vld [vmem:[%s3 + $0x1] sm:$0x1]
        %v798 = vpack.c.bf16 %v758, %v758
        %v799 = vpack.c.bf16 %v760, %v760
        %v800 = vpack.c.bf16 %v763, %v763
        %v801 = vpack.c.bf16 %v765, %v765
        %v802 = vpack.c.bf16 %v768, %v768
        %v803 = vpack.c.bf16 %v770, %v770
        %v804 = vpack.c.bf16 %v773, %v773
        %v805 = vpack.c.bf16 %v775, %v775
        %v806 = vpack.c.bf16 %v778, %v778
        %v807 = vpack.c.bf16 %v780, %v780
        %v808 = vpack.c.bf16 %v783, %v783
        %v809 = vpack.c.bf16 %v785, %v785
        %v810 = vpack.c.bf16 %v788, %v788
        %v811 = vpack.c.bf16 %v790, %v790
        %v812 = vpack.c.bf16 %v793, %v793
        %v813 = vpack.c.bf16 %v795, %v795
        %v814 = vperm.slane %v797, 0
        %v816 = vsel %vm394, %v798, 0
        %818 = vmatpush.bf16.msra.mxu0 0
        %819 = vmatpush.bf16.msra.mxu0 0
        %820 = vmatpush.bf16.msra.mxu0 0
        %821 = vmatpush.bf16.msra.mxu0 0
        %822 = vmatpush.bf16.msra.mxu0 0
        %823 = vmatpush.bf16.msra.mxu0 0
        %824 = vmatpush.bf16.msra.mxu0 0
        %825 = vmatpush.bf16.msra.mxu0 %v816
        %826 = vmatmul.bf16.gmra.mxu0 %v392
        %v827 = vpop.f32.mrf.mxu0
        %v828 = vadd.f32 %v814, %v827
        %v829 = vpop.f32.mrf.mxu0
        %830 = vdwg.mxu0
        %v832 = vsel %vm394, %v799, 0
        %834 = vmatpush.bf16.msra.mxu0 0
        %835 = vmatpush.bf16.msra.mxu0 0
        %836 = vmatpush.bf16.msra.mxu0 0
        %837 = vmatpush.bf16.msra.mxu0 0
        %838 = vmatpush.bf16.msra.mxu0 0
        %839 = vmatpush.bf16.msra.mxu0 0
        %840 = vmatpush.bf16.msra.mxu0 0
        %841 = vmatpush.bf16.msra.mxu0 %v832
        %842 = vmatmul.bf16.gmra.mxu0 %v412
        %v843 = vpop.f32.mrf.mxu0
        %v844 = vadd.f32 %v814, %v843
        %v845 = vpop.f32.mrf.mxu0
        %846 = vdwg.mxu0
        %v848 = vsel %vm394, %v800, 0
        %850 = vmatpush.bf16.msra.mxu0 0
        %851 = vmatpush.bf16.msra.mxu0 0
        %852 = vmatpush.bf16.msra.mxu0 0
        %853 = vmatpush.bf16.msra.mxu0 0
        %854 = vmatpush.bf16.msra.mxu0 0
        %855 = vmatpush.bf16.msra.mxu0 0
        %856 = vmatpush.bf16.msra.mxu0 0
        %857 = vmatpush.bf16.msra.mxu0 %v848
        %858 = vmatmul.bf16.gmra.mxu0 %v431
        %v859 = vpop.f32.mrf.mxu0
        %v860 = vadd.f32 %v814, %v859
        %v861 = vpop.f32.mrf.mxu0
        %862 = vdwg.mxu0
        %v864 = vsel %vm394, %v801, 0
        %866 = vmatpush.bf16.msra.mxu0 0
        %867 = vmatpush.bf16.msra.mxu0 0
        %868 = vmatpush.bf16.msra.mxu0 0
        %869 = vmatpush.bf16.msra.mxu0 0
        %870 = vmatpush.bf16.msra.mxu0 0
        %871 = vmatpush.bf16.msra.mxu0 0
        %872 = vmatpush.bf16.msra.mxu0 0
        %873 = vmatpush.bf16.msra.mxu0 %v864
        %874 = vmatmul.bf16.gmra.mxu0 %v450
        %v875 = vpop.f32.mrf.mxu0
        %v876 = vadd.f32 %v814, %v875
        %v877 = vpop.f32.mrf.mxu0
        %878 = vdwg.mxu0
        %v880 = vsel %vm394, %v802, 0
        %882 = vmatpush.bf16.msra.mxu0 0
        %883 = vmatpush.bf16.msra.mxu0 0
        %884 = vmatpush.bf16.msra.mxu0 0
        %885 = vmatpush.bf16.msra.mxu0 0
        %886 = vmatpush.bf16.msra.mxu0 0
        %887 = vmatpush.bf16.msra.mxu0 0
        %888 = vmatpush.bf16.msra.mxu0 0
        %889 = vmatpush.bf16.msra.mxu0 %v880
        %890 = vmatmul.bf16.gmra.mxu0 %v469
        %v891 = vpop.f32.mrf.mxu0
        %v892 = vadd.f32 %v814, %v891
        %v893 = vpop.f32.mrf.mxu0
        %894 = vdwg.mxu0
        %v896 = vsel %vm394, %v803, 0
        %898 = vmatpush.bf16.msra.mxu0 0
        %899 = vmatpush.bf16.msra.mxu0 0
        %900 = vmatpush.bf16.msra.mxu0 0
        %901 = vmatpush.bf16.msra.mxu0 0
        %902 = vmatpush.bf16.msra.mxu0 0
        %903 = vmatpush.bf16.msra.mxu0 0
        %904 = vmatpush.bf16.msra.mxu0 0
        %905 = vmatpush.bf16.msra.mxu0 %v896
        %906 = vmatmul.bf16.gmra.mxu0 %v488
        %v907 = vpop.f32.mrf.mxu0
        %v908 = vadd.f32 %v814, %v907
        %v909 = vpop.f32.mrf.mxu0
        %910 = vdwg.mxu0
        %v912 = vsel %vm394, %v804, 0
        %914 = vmatpush.bf16.msra.mxu0 0
        %915 = vmatpush.bf16.msra.mxu0 0
        %916 = vmatpush.bf16.msra.mxu0 0
        %917 = vmatpush.bf16.msra.mxu0 0
        %918 = vmatpush.bf16.msra.mxu0 0
        %919 = vmatpush.bf16.msra.mxu0 0
        %920 = vmatpush.bf16.msra.mxu0 0
        %921 = vmatpush.bf16.msra.mxu0 %v912
        %922 = vmatmul.bf16.gmra.mxu0 %v507
        %v923 = vpop.f32.mrf.mxu0
        %v924 = vadd.f32 %v814, %v923
        %v925 = vpop.f32.mrf.mxu0
        %926 = vdwg.mxu0
        %v928 = vsel %vm394, %v805, 0
        %930 = vmatpush.bf16.msra.mxu0 0
        %931 = vmatpush.bf16.msra.mxu0 0
        %932 = vmatpush.bf16.msra.mxu0 0
        %933 = vmatpush.bf16.msra.mxu0 0
        %934 = vmatpush.bf16.msra.mxu0 0
        %935 = vmatpush.bf16.msra.mxu0 0
        %936 = vmatpush.bf16.msra.mxu0 0
        %937 = vmatpush.bf16.msra.mxu0 %v928
        %938 = vmatmul.bf16.gmra.mxu0 %v526
        %v939 = vpop.f32.mrf.mxu0
        %v940 = vadd.f32 %v814, %v939
        %v941 = vpop.f32.mrf.mxu0
        %942 = vdwg.mxu0
        %v944 = vsel %vm394, %v806, 0
        %946 = vmatpush.bf16.msra.mxu0 0
        %947 = vmatpush.bf16.msra.mxu0 0
        %948 = vmatpush.bf16.msra.mxu0 0
        %949 = vmatpush.bf16.msra.mxu0 0
        %950 = vmatpush.bf16.msra.mxu0 0
        %951 = vmatpush.bf16.msra.mxu0 0
        %952 = vmatpush.bf16.msra.mxu0 0
        %953 = vmatpush.bf16.msra.mxu0 %v944
        %954 = vmatmul.bf16.gmra.mxu0 %v545
        %v955 = vpop.f32.mrf.mxu0
        %v956 = vadd.f32 %v814, %v955
        %v957 = vpop.f32.mrf.mxu0
        %958 = vdwg.mxu0
        %v960 = vsel %vm394, %v807, 0
        %962 = vmatpush.bf16.msra.mxu0 0
        %963 = vmatpush.bf16.msra.mxu0 0
        %964 = vmatpush.bf16.msra.mxu0 0
        %965 = vmatpush.bf16.msra.mxu0 0
        %966 = vmatpush.bf16.msra.mxu0 0
        %967 = vmatpush.bf16.msra.mxu0 0
        %968 = vmatpush.bf16.msra.mxu0 0
        %969 = vmatpush.bf16.msra.mxu0 %v960
        %970 = vmatmul.bf16.gmra.mxu0 %v564
        %v971 = vpop.f32.mrf.mxu0
        %v972 = vadd.f32 %v814, %v971
        %v973 = vpop.f32.mrf.mxu0
        %974 = vdwg.mxu0
        %v976 = vsel %vm394, %v808, 0
        %978 = vmatpush.bf16.msra.mxu0 0
        %979 = vmatpush.bf16.msra.mxu0 0
        %980 = vmatpush.bf16.msra.mxu0 0
        %981 = vmatpush.bf16.msra.mxu0 0
        %982 = vmatpush.bf16.msra.mxu0 0
        %983 = vmatpush.bf16.msra.mxu0 0
        %984 = vmatpush.bf16.msra.mxu0 0
        %985 = vmatpush.bf16.msra.mxu0 %v976
        %986 = vmatmul.bf16.gmra.mxu0 %v583
        %v987 = vpop.f32.mrf.mxu0
        %v988 = vadd.f32 %v814, %v987
        %v989 = vpop.f32.mrf.mxu0
        %990 = vdwg.mxu0
        %v992 = vsel %vm394, %v809, 0
        %994 = vmatpush.bf16.msra.mxu0 0
        %995 = vmatpush.bf16.msra.mxu0 0
        %996 = vmatpush.bf16.msra.mxu0 0
        %997 = vmatpush.bf16.msra.mxu0 0
        %998 = vmatpush.bf16.msra.mxu0 0
        %999 = vmatpush.bf16.msra.mxu0 0
        %1000 = vmatpush.bf16.msra.mxu0 0
        %1001 = vmatpush.bf16.msra.mxu0 %v992
        %1002 = vmatmul.bf16.gmra.mxu0 %v602
        %v1003 = vpop.f32.mrf.mxu0
        %v1004 = vadd.f32 %v814, %v1003
        %v1005 = vpop.f32.mrf.mxu0
        %1006 = vdwg.mxu0
        %v1008 = vsel %vm394, %v810, 0
        %1010 = vmatpush.bf16.msra.mxu0 0
        %1011 = vmatpush.bf16.msra.mxu0 0
        %1012 = vmatpush.bf16.msra.mxu0 0
        %1013 = vmatpush.bf16.msra.mxu0 0
        %1014 = vmatpush.bf16.msra.mxu0 0
        %1015 = vmatpush.bf16.msra.mxu0 0
        %1016 = vmatpush.bf16.msra.mxu0 0
        %1017 = vmatpush.bf16.msra.mxu0 %v1008
        %1018 = vmatmul.bf16.gmra.mxu0 %v621
        %v1019 = vpop.f32.mrf.mxu0
        %v1020 = vadd.f32 %v814, %v1019
        %v1021 = vpop.f32.mrf.mxu0
        %1022 = vdwg.mxu0
        %v1024 = vsel %vm394, %v811, 0
        %1026 = vmatpush.bf16.msra.mxu0 0
        %1027 = vmatpush.bf16.msra.mxu0 0
        %1028 = vmatpush.bf16.msra.mxu0 0
        %1029 = vmatpush.bf16.msra.mxu0 0
        %1030 = vmatpush.bf16.msra.mxu0 0
        %1031 = vmatpush.bf16.msra.mxu0 0
        %1032 = vmatpush.bf16.msra.mxu0 0
        %1033 = vmatpush.bf16.msra.mxu0 %v1024
        %1034 = vmatmul.bf16.gmra.mxu0 %v640
        %v1035 = vpop.f32.mrf.mxu0
        %v1036 = vadd.f32 %v814, %v1035
        %v1037 = vpop.f32.mrf.mxu0
        %1038 = vdwg.mxu0
        %v1040 = vsel %vm394, %v812, 0
        %1042 = vmatpush.bf16.msra.mxu0 0
        %1043 = vmatpush.bf16.msra.mxu0 0
        %1044 = vmatpush.bf16.msra.mxu0 0
        %1045 = vmatpush.bf16.msra.mxu0 0
        %1046 = vmatpush.bf16.msra.mxu0 0
        %1047 = vmatpush.bf16.msra.mxu0 0
        %1048 = vmatpush.bf16.msra.mxu0 0
        %1049 = vmatpush.bf16.msra.mxu0 %v1040
        %1050 = vmatmul.bf16.gmra.mxu0 %v659
        %v1051 = vpop.f32.mrf.mxu0
        %v1052 = vadd.f32 %v814, %v1051
        %v1053 = vpop.f32.mrf.mxu0
        %1054 = vdwg.mxu0
        %v1056 = vsel %vm394, %v813, 0
        %1058 = vmatpush.bf16.msra.mxu0 0
        %1059 = vmatpush.bf16.msra.mxu0 0
        %1060 = vmatpush.bf16.msra.mxu0 0
        %1061 = vmatpush.bf16.msra.mxu0 0
        %1062 = vmatpush.bf16.msra.mxu0 0
        %1063 = vmatpush.bf16.msra.mxu0 0
        %1064 = vmatpush.bf16.msra.mxu0 0
        %1065 = vmatpush.bf16.msra.mxu0 %v1056
        %1066 = vmatmul.bf16.gmra.mxu0 %v678
        %v1067 = vpop.f32.mrf.mxu0
        %v1068 = vadd.f32 %v814, %v1067
        %v1069 = vpop.f32.mrf.mxu0
        %1070 = vdwg.mxu0
        %v1071 = vmax.f32 %v828, 0.0
        %v1072 = vmax.f32 %v844, 0.0
        %v1073 = vmax.f32 %v860, 0.0
        %v1074 = vmax.f32 %v876, 0.0
        %v1075 = vmax.f32 %v892, 0.0
        %v1076 = vmax.f32 %v908, 0.0
        %v1077 = vmax.f32 %v924, 0.0
        %v1078 = vmax.f32 %v940, 0.0
        %v1079 = vmax.f32 %v956, 0.0
        %v1080 = vmax.f32 %v972, 0.0
        %v1081 = vmax.f32 %v988, 0.0
        %v1082 = vmax.f32 %v1004, 0.0
        %v1083 = vmax.f32 %v1020, 0.0
        %v1084 = vmax.f32 %v1036, 0.0
        %v1085 = vmax.f32 %v1052, 0.0
        %v1086 = vmax.f32 %v1068, 0.0
        %v1087 = vpack.c.bf16 %v1072, %v1071
        %v1088 = vpack.c.bf16 %v1074, %v1073
        %v1089 = vpack.c.bf16 %v1076, %v1075
        %v1090 = vpack.c.bf16 %v1078, %v1077
        %v1091 = vpack.c.bf16 %v1080, %v1079
        %v1092 = vpack.c.bf16 %v1082, %v1081
        %v1093 = vpack.c.bf16 %v1084, %v1083
        %v1094 = vpack.c.bf16 %v1086, %v1085
        %v1095 = vld [vmem:[%s2 + $0x8] sm:$0xf]
        %v1097 = vsel %vm390, %v1087, 0
        %v1100 = vsel %vm390, %v1088, 0
        %v1103 = vsel %vm390, %v1089, 0
        %v1106 = vsel %vm390, %v1090, 0
        %v1109 = vsel %vm390, %v1091, 0
        %v1112 = vsel %vm390, %v1092, 0
        %v1115 = vsel %vm390, %v1093, 0
        %v1118 = vsel %vm390, %v1094, 0
        %v1121 = vsel %vm394, %v1095, 0
        %1123 = vmatpush.bf16.msra.mxu0 0
        %1124 = vmatpush.bf16.msra.mxu0 0
        %1125 = vmatpush.bf16.msra.mxu0 0
        %1126 = vmatpush.bf16.msra.mxu0 0
        %1127 = vmatpush.bf16.msra.mxu0 0
        %1128 = vmatpush.bf16.msra.mxu0 0
        %1129 = vmatpush.bf16.msra.mxu0 0
        %1130 = vmatpush.bf16.msra.mxu0 %v1121
        %1131 = vmatmul.bf16.gmra.mxu0 %v1097
        %v1132 = vpop.f32.mrf.mxu0
        %v1133 = vadd.f32 0.0, %v1132
        %v1134 = vpop.f32.mrf.mxu0
        %v1135 = vadd.f32 0.0, %v1134
        %1136 = vmatmul.bf16.gmra.mxu0 %v1100
        %v1137 = vpop.f32.mrf.mxu0
        %v1138 = vadd.f32 0.0, %v1137
        %v1139 = vpop.f32.mrf.mxu0
        %v1140 = vadd.f32 0.0, %v1139
        %1141 = vmatmul.bf16.gmra.mxu0 %v1103
        %v1142 = vpop.f32.mrf.mxu0
        %v1143 = vadd.f32 0.0, %v1142
        %v1144 = vpop.f32.mrf.mxu0
        %v1145 = vadd.f32 0.0, %v1144
        %1146 = vmatmul.bf16.gmra.mxu0 %v1106
        %v1147 = vpop.f32.mrf.mxu0
        %v1148 = vadd.f32 0.0, %v1147
        %v1149 = vpop.f32.mrf.mxu0
        %v1150 = vadd.f32 0.0, %v1149
        %1151 = vmatmul.bf16.gmra.mxu0 %v1109
        %v1152 = vpop.f32.mrf.mxu0
        %v1153 = vadd.f32 0.0, %v1152
        %v1154 = vpop.f32.mrf.mxu0
        %v1155 = vadd.f32 0.0, %v1154
        %1156 = vmatmul.bf16.gmra.mxu0 %v1112
        %v1157 = vpop.f32.mrf.mxu0
        %v1158 = vadd.f32 0.0, %v1157
        %v1159 = vpop.f32.mrf.mxu0
        %v1160 = vadd.f32 0.0, %v1159
        %1161 = vmatmul.bf16.gmra.mxu0 %v1115
        %v1162 = vpop.f32.mrf.mxu0
        %v1163 = vadd.f32 0.0, %v1162
        %v1164 = vpop.f32.mrf.mxu0
        %v1165 = vadd.f32 0.0, %v1164
        %1166 = vmatmul.bf16.gmra.mxu0 %v1118
        %v1167 = vpop.f32.mrf.mxu0
        %v1168 = vadd.f32 0.0, %v1167
        %v1169 = vpop.f32.mrf.mxu0
        %v1170 = vadd.f32 0.0, %v1169
        %1171 = vdwg.mxu0
        %v1172 = vld [vmem:[%s3 + $0x2] sm:$0x1]
        %v1173 = vpack.c.bf16 %v1133, %v1133
        %v1174 = vpack.c.bf16 %v1135, %v1135
        %v1175 = vpack.c.bf16 %v1138, %v1138
        %v1176 = vpack.c.bf16 %v1140, %v1140
        %v1177 = vpack.c.bf16 %v1143, %v1143
        %v1178 = vpack.c.bf16 %v1145, %v1145
        %v1179 = vpack.c.bf16 %v1148, %v1148
        %v1180 = vpack.c.bf16 %v1150, %v1150
        %v1181 = vpack.c.bf16 %v1153, %v1153
        %v1182 = vpack.c.bf16 %v1155, %v1155
        %v1183 = vpack.c.bf16 %v1158, %v1158
        %v1184 = vpack.c.bf16 %v1160, %v1160
        %v1185 = vpack.c.bf16 %v1163, %v1163
        %v1186 = vpack.c.bf16 %v1165, %v1165
        %v1187 = vpack.c.bf16 %v1168, %v1168
        %v1188 = vpack.c.bf16 %v1170, %v1170
        %v1189 = vperm.slane %v1172, 0
        %v1191 = vsel %vm394, %v1173, 0
        %1193 = vmatpush.bf16.msra.mxu0 0
        %1194 = vmatpush.bf16.msra.mxu0 0
        %1195 = vmatpush.bf16.msra.mxu0 0
        %1196 = vmatpush.bf16.msra.mxu0 0
        %1197 = vmatpush.bf16.msra.mxu0 0
        %1198 = vmatpush.bf16.msra.mxu0 0
        %1199 = vmatpush.bf16.msra.mxu0 0
        %1200 = vmatpush.bf16.msra.mxu0 %v1191
        %1201 = vmatmul.bf16.gmra.mxu0 %v392
        %v1202 = vpop.f32.mrf.mxu0
        %v1203 = vadd.f32 %v1189, %v1202
        %v1204 = vpop.f32.mrf.mxu0
        %1205 = vdwg.mxu0
        %v1207 = vsel %vm394, %v1174, 0
        %1209 = vmatpush.bf16.msra.mxu0 0
        %1210 = vmatpush.bf16.msra.mxu0 0
        %1211 = vmatpush.bf16.msra.mxu0 0
        %1212 = vmatpush.bf16.msra.mxu0 0
        %1213 = vmatpush.bf16.msra.mxu0 0
        %1214 = vmatpush.bf16.msra.mxu0 0
        %1215 = vmatpush.bf16.msra.mxu0 0
        %1216 = vmatpush.bf16.msra.mxu0 %v1207
        %1217 = vmatmul.bf16.gmra.mxu0 %v412
        %v1218 = vpop.f32.mrf.mxu0
        %v1219 = vadd.f32 %v1189, %v1218
        %v1220 = vpop.f32.mrf.mxu0
        %1221 = vdwg.mxu0
        %v1223 = vsel %vm394, %v1175, 0
        %1225 = vmatpush.bf16.msra.mxu0 0
        %1226 = vmatpush.bf16.msra.mxu0 0
        %1227 = vmatpush.bf16.msra.mxu0 0
        %1228 = vmatpush.bf16.msra.mxu0 0
        %1229 = vmatpush.bf16.msra.mxu0 0
        %1230 = vmatpush.bf16.msra.mxu0 0
        %1231 = vmatpush.bf16.msra.mxu0 0
        %1232 = vmatpush.bf16.msra.mxu0 %v1223
        %1233 = vmatmul.bf16.gmra.mxu0 %v431
        %v1234 = vpop.f32.mrf.mxu0
        %v1235 = vadd.f32 %v1189, %v1234
        %v1236 = vpop.f32.mrf.mxu0
        %1237 = vdwg.mxu0
        %v1239 = vsel %vm394, %v1176, 0
        %1241 = vmatpush.bf16.msra.mxu0 0
        %1242 = vmatpush.bf16.msra.mxu0 0
        %1243 = vmatpush.bf16.msra.mxu0 0
        %1244 = vmatpush.bf16.msra.mxu0 0
        %1245 = vmatpush.bf16.msra.mxu0 0
        %1246 = vmatpush.bf16.msra.mxu0 0
        %1247 = vmatpush.bf16.msra.mxu0 0
        %1248 = vmatpush.bf16.msra.mxu0 %v1239
        %1249 = vmatmul.bf16.gmra.mxu0 %v450
        %v1250 = vpop.f32.mrf.mxu0
        %v1251 = vadd.f32 %v1189, %v1250
        %v1252 = vpop.f32.mrf.mxu0
        %1253 = vdwg.mxu0
        %v1255 = vsel %vm394, %v1177, 0
        %1257 = vmatpush.bf16.msra.mxu0 0
        %1258 = vmatpush.bf16.msra.mxu0 0
        %1259 = vmatpush.bf16.msra.mxu0 0
        %1260 = vmatpush.bf16.msra.mxu0 0
        %1261 = vmatpush.bf16.msra.mxu0 0
        %1262 = vmatpush.bf16.msra.mxu0 0
        %1263 = vmatpush.bf16.msra.mxu0 0
        %1264 = vmatpush.bf16.msra.mxu0 %v1255
        %1265 = vmatmul.bf16.gmra.mxu0 %v469
        %v1266 = vpop.f32.mrf.mxu0
        %v1267 = vadd.f32 %v1189, %v1266
        %v1268 = vpop.f32.mrf.mxu0
        %1269 = vdwg.mxu0
        %v1271 = vsel %vm394, %v1178, 0
        %1273 = vmatpush.bf16.msra.mxu0 0
        %1274 = vmatpush.bf16.msra.mxu0 0
        %1275 = vmatpush.bf16.msra.mxu0 0
        %1276 = vmatpush.bf16.msra.mxu0 0
        %1277 = vmatpush.bf16.msra.mxu0 0
        %1278 = vmatpush.bf16.msra.mxu0 0
        %1279 = vmatpush.bf16.msra.mxu0 0
        %1280 = vmatpush.bf16.msra.mxu0 %v1271
        %1281 = vmatmul.bf16.gmra.mxu0 %v488
        %v1282 = vpop.f32.mrf.mxu0
        %v1283 = vadd.f32 %v1189, %v1282
        %v1284 = vpop.f32.mrf.mxu0
        %1285 = vdwg.mxu0
        %v1287 = vsel %vm394, %v1179, 0
        %1289 = vmatpush.bf16.msra.mxu0 0
        %1290 = vmatpush.bf16.msra.mxu0 0
        %1291 = vmatpush.bf16.msra.mxu0 0
        %1292 = vmatpush.bf16.msra.mxu0 0
        %1293 = vmatpush.bf16.msra.mxu0 0
        %1294 = vmatpush.bf16.msra.mxu0 0
        %1295 = vmatpush.bf16.msra.mxu0 0
        %1296 = vmatpush.bf16.msra.mxu0 %v1287
        %1297 = vmatmul.bf16.gmra.mxu0 %v507
        %v1298 = vpop.f32.mrf.mxu0
        %v1299 = vadd.f32 %v1189, %v1298
        %v1300 = vpop.f32.mrf.mxu0
        %1301 = vdwg.mxu0
        %v1303 = vsel %vm394, %v1180, 0
        %1305 = vmatpush.bf16.msra.mxu0 0
        %1306 = vmatpush.bf16.msra.mxu0 0
        %1307 = vmatpush.bf16.msra.mxu0 0
        %1308 = vmatpush.bf16.msra.mxu0 0
        %1309 = vmatpush.bf16.msra.mxu0 0
        %1310 = vmatpush.bf16.msra.mxu0 0
        %1311 = vmatpush.bf16.msra.mxu0 0
        %1312 = vmatpush.bf16.msra.mxu0 %v1303
        %1313 = vmatmul.bf16.gmra.mxu0 %v526
        %v1314 = vpop.f32.mrf.mxu0
        %v1315 = vadd.f32 %v1189, %v1314
        %v1316 = vpop.f32.mrf.mxu0
        %1317 = vdwg.mxu0
        %v1319 = vsel %vm394, %v1181, 0
        %1321 = vmatpush.bf16.msra.mxu0 0
        %1322 = vmatpush.bf16.msra.mxu0 0
        %1323 = vmatpush.bf16.msra.mxu0 0
        %1324 = vmatpush.bf16.msra.mxu0 0
        %1325 = vmatpush.bf16.msra.mxu0 0
        %1326 = vmatpush.bf16.msra.mxu0 0
        %1327 = vmatpush.bf16.msra.mxu0 0
        %1328 = vmatpush.bf16.msra.mxu0 %v1319
        %1329 = vmatmul.bf16.gmra.mxu0 %v545
        %v1330 = vpop.f32.mrf.mxu0
        %v1331 = vadd.f32 %v1189, %v1330
        %v1332 = vpop.f32.mrf.mxu0
        %1333 = vdwg.mxu0
        %v1335 = vsel %vm394, %v1182, 0
        %1337 = vmatpush.bf16.msra.mxu0 0
        %1338 = vmatpush.bf16.msra.mxu0 0
        %1339 = vmatpush.bf16.msra.mxu0 0
        %1340 = vmatpush.bf16.msra.mxu0 0
        %1341 = vmatpush.bf16.msra.mxu0 0
        %1342 = vmatpush.bf16.msra.mxu0 0
        %1343 = vmatpush.bf16.msra.mxu0 0
        %1344 = vmatpush.bf16.msra.mxu0 %v1335
        %1345 = vmatmul.bf16.gmra.mxu0 %v564
        %v1346 = vpop.f32.mrf.mxu0
        %v1347 = vadd.f32 %v1189, %v1346
        %v1348 = vpop.f32.mrf.mxu0
        %1349 = vdwg.mxu0
        %v1351 = vsel %vm394, %v1183, 0
        %1353 = vmatpush.bf16.msra.mxu0 0
        %1354 = vmatpush.bf16.msra.mxu0 0
        %1355 = vmatpush.bf16.msra.mxu0 0
        %1356 = vmatpush.bf16.msra.mxu0 0
        %1357 = vmatpush.bf16.msra.mxu0 0
        %1358 = vmatpush.bf16.msra.mxu0 0
        %1359 = vmatpush.bf16.msra.mxu0 0
        %1360 = vmatpush.bf16.msra.mxu0 %v1351
        %1361 = vmatmul.bf16.gmra.mxu0 %v583
        %v1362 = vpop.f32.mrf.mxu0
        %v1363 = vadd.f32 %v1189, %v1362
        %v1364 = vpop.f32.mrf.mxu0
        %1365 = vdwg.mxu0
        %v1367 = vsel %vm394, %v1184, 0
        %1369 = vmatpush.bf16.msra.mxu0 0
        %1370 = vmatpush.bf16.msra.mxu0 0
        %1371 = vmatpush.bf16.msra.mxu0 0
        %1372 = vmatpush.bf16.msra.mxu0 0
        %1373 = vmatpush.bf16.msra.mxu0 0
        %1374 = vmatpush.bf16.msra.mxu0 0
        %1375 = vmatpush.bf16.msra.mxu0 0
        %1376 = vmatpush.bf16.msra.mxu0 %v1367
        %1377 = vmatmul.bf16.gmra.mxu0 %v602
        %v1378 = vpop.f32.mrf.mxu0
        %v1379 = vadd.f32 %v1189, %v1378
        %v1380 = vpop.f32.mrf.mxu0
        %1381 = vdwg.mxu0
        %v1383 = vsel %vm394, %v1185, 0
        %1385 = vmatpush.bf16.msra.mxu0 0
        %1386 = vmatpush.bf16.msra.mxu0 0
        %1387 = vmatpush.bf16.msra.mxu0 0
        %1388 = vmatpush.bf16.msra.mxu0 0
        %1389 = vmatpush.bf16.msra.mxu0 0
        %1390 = vmatpush.bf16.msra.mxu0 0
        %1391 = vmatpush.bf16.msra.mxu0 0
        %1392 = vmatpush.bf16.msra.mxu0 %v1383
        %1393 = vmatmul.bf16.gmra.mxu0 %v621
        %v1394 = vpop.f32.mrf.mxu0
        %v1395 = vadd.f32 %v1189, %v1394
        %v1396 = vpop.f32.mrf.mxu0
        %1397 = vdwg.mxu0
        %v1399 = vsel %vm394, %v1186, 0
        %1401 = vmatpush.bf16.msra.mxu0 0
        %1402 = vmatpush.bf16.msra.mxu0 0
        %1403 = vmatpush.bf16.msra.mxu0 0
        %1404 = vmatpush.bf16.msra.mxu0 0
        %1405 = vmatpush.bf16.msra.mxu0 0
        %1406 = vmatpush.bf16.msra.mxu0 0
        %1407 = vmatpush.bf16.msra.mxu0 0
        %1408 = vmatpush.bf16.msra.mxu0 %v1399
        %1409 = vmatmul.bf16.gmra.mxu0 %v640
        %v1410 = vpop.f32.mrf.mxu0
        %v1411 = vadd.f32 %v1189, %v1410
        %v1412 = vpop.f32.mrf.mxu0
        %1413 = vdwg.mxu0
        %v1415 = vsel %vm394, %v1187, 0
        %1417 = vmatpush.bf16.msra.mxu0 0
        %1418 = vmatpush.bf16.msra.mxu0 0
        %1419 = vmatpush.bf16.msra.mxu0 0
        %1420 = vmatpush.bf16.msra.mxu0 0
        %1421 = vmatpush.bf16.msra.mxu0 0
        %1422 = vmatpush.bf16.msra.mxu0 0
        %1423 = vmatpush.bf16.msra.mxu0 0
        %1424 = vmatpush.bf16.msra.mxu0 %v1415
        %1425 = vmatmul.bf16.gmra.mxu0 %v659
        %v1426 = vpop.f32.mrf.mxu0
        %v1427 = vadd.f32 %v1189, %v1426
        %v1428 = vpop.f32.mrf.mxu0
        %1429 = vdwg.mxu0
        %v1431 = vsel %vm394, %v1188, 0
        %1433 = vmatpush.bf16.msra.mxu0 0
        %1434 = vmatpush.bf16.msra.mxu0 0
        %1435 = vmatpush.bf16.msra.mxu0 0
        %1436 = vmatpush.bf16.msra.mxu0 0
        %1437 = vmatpush.bf16.msra.mxu0 0
        %1438 = vmatpush.bf16.msra.mxu0 0
        %1439 = vmatpush.bf16.msra.mxu0 0
        %1440 = vmatpush.bf16.msra.mxu0 %v1431
        %1441 = vmatmul.bf16.gmra.mxu0 %v678
        %v1442 = vpop.f32.mrf.mxu0
        %v1443 = vadd.f32 %v1189, %v1442
        %v1444 = vpop.f32.mrf.mxu0
        %1445 = vdwg.mxu0
        %v1446 = vmax.f32 %v1203, 0.0
        %v1447 = vmax.f32 %v1219, 0.0
        %v1448 = vmax.f32 %v1235, 0.0
        %v1449 = vmax.f32 %v1251, 0.0
        %v1450 = vmax.f32 %v1267, 0.0
        %v1451 = vmax.f32 %v1283, 0.0
        %v1452 = vmax.f32 %v1299, 0.0
        %v1453 = vmax.f32 %v1315, 0.0
        %v1454 = vmax.f32 %v1331, 0.0
        %v1455 = vmax.f32 %v1347, 0.0
        %v1456 = vmax.f32 %v1363, 0.0
        %v1457 = vmax.f32 %v1379, 0.0
        %v1458 = vmax.f32 %v1395, 0.0
        %v1459 = vmax.f32 %v1411, 0.0
        %v1460 = vmax.f32 %v1427, 0.0
        %v1461 = vmax.f32 %v1443, 0.0
        %v1462 = vpack.c.bf16 %v1447, %v1446
        %v1463 = vpack.c.bf16 %v1449, %v1448
        %v1464 = vpack.c.bf16 %v1451, %v1450
        %v1465 = vpack.c.bf16 %v1453, %v1452
        %v1466 = vpack.c.bf16 %v1455, %v1454
        %v1467 = vpack.c.bf16 %v1457, %v1456
        %v1468 = vpack.c.bf16 %v1459, %v1458
        %v1469 = vpack.c.bf16 %v1461, %v1460
        %v1470 = vld [vmem:[%s2 + $0xc] sm:$0x1]
        %v1471 = vld [vmem:[%s3 + $0x3] sm:$0x1]
        %1473 = vset.pattern.permute.xlu0 0
        %1474 = vperm.xlu0 %1473, %v1471
        %v1475 = vpop.permute.xlu0 %1474
        %v1478 = vsel %vm390, %v1470, 0
        %v1481 = vsel %vm390, %v1462, 0
        %v1484 = vsel %vm390, %v1463, 0
        %v1487 = vsel %vm390, %v1464, 0
        %v1490 = vsel %vm390, %v1465, 0
        %v1493 = vsel %vm390, %v1466, 0
        %v1496 = vsel %vm390, %v1467, 0
        %v1499 = vsel %vm390, %v1468, 0
        %v1502 = vsel %vm390, %v1469, 0
        %1504 = vmatpush.bf16.xpose.msra.mxu0 %v1502
        %1505 = vmatpush.bf16.xpose.msra.mxu0 %v1499
        %1506 = vmatpush.bf16.xpose.msra.mxu0 %v1496
        %1507 = vmatpush.bf16.xpose.msra.mxu0 %v1493
        %1508 = vmatpush.bf16.xpose.msra.mxu0 %v1490
        %1509 = vmatpush.bf16.xpose.msra.mxu0 %v1487
        %1510 = vmatpush.bf16.xpose.msra.mxu0 %v1484
        %1511 = vmatpush.bf16.xpose.msra.mxu0 %v1481
        %1512 = vmatmul.bf16.gmra.mxu0 %v1478
        %v1513 = vpop.f32.mrf.mxu0
        %v1514 = vadd.f32 %v1475, %v1513
        %v1515 = vpop.f32.mrf.mxu0
        %1516 = vdwg.mxu0
        %v1517 = vsel %vm390, %v1446, 0.0
        %v1518 = vrot.slane %v1517, 4
        %v1519 = vadd.f32 %v1517, %v1518
        %v1520 = vrot.slane %v1519, 2
        %v1521 = vadd.f32 %v1519, %v1520
        %v1522 = vrot.slane %v1521, 1
        %v1523 = vadd.f32 %v1521, %v1522
        %v1524 = vsel %vm390, %v1447, 0.0
        %v1525 = vrot.slane %v1524, 4
        %v1526 = vadd.f32 %v1524, %v1525
        %v1527 = vrot.slane %v1526, 2
        %v1528 = vadd.f32 %v1526, %v1527
        %v1529 = vrot.slane %v1528, 1
        %v1530 = vadd.f32 %v1528, %v1529
        %v1531 = vsel %vm390, %v1448, 0.0
        %v1532 = vrot.slane %v1531, 4
        %v1533 = vadd.f32 %v1531, %v1532
        %v1534 = vrot.slane %v1533, 2
        %v1535 = vadd.f32 %v1533, %v1534
        %v1536 = vrot.slane %v1535, 1
        %v1537 = vadd.f32 %v1535, %v1536
        %v1538 = vsel %vm390, %v1449, 0.0
        %v1539 = vrot.slane %v1538, 4
        %v1540 = vadd.f32 %v1538, %v1539
        %v1541 = vrot.slane %v1540, 2
        %v1542 = vadd.f32 %v1540, %v1541
        %v1543 = vrot.slane %v1542, 1
        %v1544 = vadd.f32 %v1542, %v1543
        %v1545 = vsel %vm390, %v1450, 0.0
        %v1546 = vrot.slane %v1545, 4
        %v1547 = vadd.f32 %v1545, %v1546
        %v1548 = vrot.slane %v1547, 2
        %v1549 = vadd.f32 %v1547, %v1548
        %v1550 = vrot.slane %v1549, 1
        %v1551 = vadd.f32 %v1549, %v1550
        %v1552 = vsel %vm390, %v1451, 0.0
        %v1553 = vrot.slane %v1552, 4
        %v1554 = vadd.f32 %v1552, %v1553
        %v1555 = vrot.slane %v1554, 2
        %v1556 = vadd.f32 %v1554, %v1555
        %v1557 = vrot.slane %v1556, 1
        %v1558 = vadd.f32 %v1556, %v1557
        %v1559 = vsel %vm390, %v1452, 0.0
        %v1560 = vrot.slane %v1559, 4
        %v1561 = vadd.f32 %v1559, %v1560
        %v1562 = vrot.slane %v1561, 2
        %v1563 = vadd.f32 %v1561, %v1562
        %v1564 = vrot.slane %v1563, 1
        %v1565 = vadd.f32 %v1563, %v1564
        %v1566 = vsel %vm390, %v1453, 0.0
        %v1567 = vrot.slane %v1566, 4
        %v1568 = vadd.f32 %v1566, %v1567
        %v1569 = vrot.slane %v1568, 2
        %v1570 = vadd.f32 %v1568, %v1569
        %v1571 = vrot.slane %v1570, 1
        %v1572 = vadd.f32 %v1570, %v1571
        %v1573 = vsel %vm390, %v1454, 0.0
        %v1574 = vrot.slane %v1573, 4
        %v1575 = vadd.f32 %v1573, %v1574
        %v1576 = vrot.slane %v1575, 2
        %v1577 = vadd.f32 %v1575, %v1576
        %v1578 = vrot.slane %v1577, 1
        %v1579 = vadd.f32 %v1577, %v1578
        %v1580 = vsel %vm390, %v1455, 0.0
        %v1581 = vrot.slane %v1580, 4
        %v1582 = vadd.f32 %v1580, %v1581
        %v1583 = vrot.slane %v1582, 2
        %v1584 = vadd.f32 %v1582, %v1583
        %v1585 = vrot.slane %v1584, 1
        %v1586 = vadd.f32 %v1584, %v1585
        %v1587 = vsel %vm390, %v1456, 0.0
        %v1588 = vrot.slane %v1587, 4
        %v1589 = vadd.f32 %v1587, %v1588
        %v1590 = vrot.slane %v1589, 2
        %v1591 = vadd.f32 %v1589, %v1590
        %v1592 = vrot.slane %v1591, 1
        %v1593 = vadd.f32 %v1591, %v1592
        %v1594 = vsel %vm390, %v1457, 0.0
        %v1595 = vrot.slane %v1594, 4
        %v1596 = vadd.f32 %v1594, %v1595
        %v1597 = vrot.slane %v1596, 2
        %v1598 = vadd.f32 %v1596, %v1597
        %v1599 = vrot.slane %v1598, 1
        %v1600 = vadd.f32 %v1598, %v1599
        %v1601 = vsel %vm390, %v1458, 0.0
        %v1602 = vrot.slane %v1601, 4
        %v1603 = vadd.f32 %v1601, %v1602
        %v1604 = vrot.slane %v1603, 2
        %v1605 = vadd.f32 %v1603, %v1604
        %v1606 = vrot.slane %v1605, 1
        %v1607 = vadd.f32 %v1605, %v1606
        %v1608 = vsel %vm390, %v1459, 0.0
        %v1609 = vrot.slane %v1608, 4
        %v1610 = vadd.f32 %v1608, %v1609
        %v1611 = vrot.slane %v1610, 2
        %v1612 = vadd.f32 %v1610, %v1611
        %v1613 = vrot.slane %v1612, 1
        %v1614 = vadd.f32 %v1612, %v1613
        %v1615 = vsel %vm390, %v1460, 0.0
        %v1616 = vrot.slane %v1615, 4
        %v1617 = vadd.f32 %v1615, %v1616
        %v1618 = vrot.slane %v1617, 2
        %v1619 = vadd.f32 %v1617, %v1618
        %v1620 = vrot.slane %v1619, 1
        %v1621 = vadd.f32 %v1619, %v1620
        %v1622 = vsel %vm390, %v1461, 0.0
        %v1623 = vrot.slane %v1622, 4
        %v1624 = vadd.f32 %v1622, %v1623
        %v1625 = vrot.slane %v1624, 2
        %v1626 = vadd.f32 %v1624, %v1625
        %v1627 = vrot.slane %v1626, 1
        %v1628 = vadd.f32 %v1626, %v1627
        %v1629 = vmul.f32 %v1523, 0.125
        %v1630 = vmul.f32 %v1530, 0.125
        %v1631 = vmul.f32 %v1537, 0.125
        %v1632 = vmul.f32 %v1544, 0.125
        %v1633 = vmul.f32 %v1551, 0.125
        %v1634 = vmul.f32 %v1558, 0.125
        %v1635 = vmul.f32 %v1565, 0.125
        %v1636 = vmul.f32 %v1572, 0.125
        %v1637 = vmul.f32 %v1579, 0.125
        %v1638 = vmul.f32 %v1586, 0.125
        %v1639 = vmul.f32 %v1593, 0.125
        %v1640 = vmul.f32 %v1600, 0.125
        %v1641 = vmul.f32 %v1607, 0.125
        %v1642 = vmul.f32 %v1614, 0.125
        %v1643 = vmul.f32 %v1621, 0.125
        %v1644 = vmul.f32 %v1628, 0.125
        %v1645 = vpack.c.bf16 %v1630, %v1629
        %v1646 = vpack.c.bf16 %v1632, %v1631
        %v1647 = vpack.c.bf16 %v1634, %v1633
        %v1648 = vpack.c.bf16 %v1636, %v1635
        %v1649 = vpack.c.bf16 %v1638, %v1637
        %v1650 = vpack.c.bf16 %v1640, %v1639
        %v1651 = vpack.c.bf16 %v1642, %v1641
        %v1652 = vpack.c.bf16 %v1644, %v1643
        %1653 = vset.pattern.permute.xlu0 1
        %1654 = vperm.xlu0 %1653, %v1471
        %v1655 = vpop.permute.xlu0 %1654
        %v1658 = vunpack.c.l.b16 %v1470
        %v1659 = vpack.c.b16 %v1658, %v1658
        %v1661 = vshrl.u32 %v1659, 16
        %v1664 = vsel %vm390, %v1661, 0
        %v1667 = vsel %vm390, %v1645, 0
        %v1670 = vsel %vm390, %v1646, 0
        %v1673 = vsel %vm390, %v1647, 0
        %v1676 = vsel %vm390, %v1648, 0
        %v1679 = vsel %vm390, %v1649, 0
        %v1682 = vsel %vm390, %v1650, 0
        %v1685 = vsel %vm390, %v1651, 0
        %v1688 = vsel %vm390, %v1652, 0
        %1690 = vmatpush.bf16.xpose.msra.mxu0 %v1688
        %1691 = vmatpush.bf16.xpose.msra.mxu0 %v1685
        %1692 = vmatpush.bf16.xpose.msra.mxu0 %v1682
        %1693 = vmatpush.bf16.xpose.msra.mxu0 %v1679
        %1694 = vmatpush.bf16.xpose.msra.mxu0 %v1676
        %1695 = vmatpush.bf16.xpose.msra.mxu0 %v1673
        %1696 = vmatpush.bf16.xpose.msra.mxu0 %v1670
        %1697 = vmatpush.bf16.xpose.msra.mxu0 %v1667
        %1698 = vmatmul.bf16.gmra.mxu0 %v1664
        %v1699 = vpop.f32.mrf.mxu0
        %v1700 = vadd.f32 %v1655, %v1699
        %v1701 = vpop.f32.mrf.mxu0
        %1702 = vdwg.mxu0
        %1703 = vst [vmem:[%s207] sm:$0x1] %v1514
        %1704 = vst [vmem:[%s207 + $0x1] sm:$0x1] %v1700
        %s1705 = sand.u32 %s120, 1
        %s1706 = scalar_lea.sflag [#allocation3], %s1705
        %s1707 = sand.u32 %s120, 1
        %s1708 = smul.addr %s1707, 2
        %s1709 = scalar_lea.vmem [#allocation2], %s1708
        // Predicated region
        $region37: #{tpu_custom_call.1} parent=35 // pred_check
          %p1710 = pneg %p130
        $region38: #{tpu_custom_call.1} parent=35 // pred_check_branch
          %1712 = sbr.rel (%p1710) target = $region40
        $region39: #{tpu_custom_call.1} parent=35 // pred_region
          %1714 = vsyncadd %s1706, 0
          %s1715 = smul.addr %s18, 2
          %s1716 = scalar_lea.hbm %s4, %s1715
          %s1718 = sshll.u32 %s1709, 4
          %s1719 = int_to_ptr.vmem [resolvable:$true] %s1718
          %s1720 = sshll.u32 %s1716, 4
          %s1721 = int_to_ptr.hbm [resolvable:$true] %s1720
          %1723 = dma.vmem_to_hbm [thread:$0]  %s1719, 32, %s1721, %s1706
        $region40: #{tpu_custom_call.1} parent=35 // pred_fallthru
          _
      $region36: #{tpu_custom_call.1} parent=5 // pred_fallthru
        _
      %p1724 = scmp.le.s32.totalorder 2, %s13
      // Predicated region
      $region41: #{tpu_custom_call.1} parent=5 // pred_check
        %p1725 = pneg %p1724
      $region42: #{tpu_custom_call.1} parent=5 // pred_check_branch
        %1727 = sbr.rel (%p1725) target = $region44
      $region43: #{tpu_custom_call.1} parent=5 // pred_region
        %s1728 = ssub.s32 %s13, 2
        // Predicated region
        $region45: #{tpu_custom_call.1} parent=43 // pred_check
          %p1729 = pneg %p136
        $region46: #{tpu_custom_call.1} parent=43 // pred_check_branch
          %1731 = sbr.rel (%p1729) target = $region48
        $region47: #{tpu_custom_call.1} parent=43 // pred_region
          %s1732 = sand.u32 %s121, 1
          %s1733 = scalar_lea.sflag [#allocation3], %s1732
          %s1734 = sand.u32 %s121, 1
          %s1735 = smul.addr %s1734, 2
          %s1736 = scalar_lea.vmem [#allocation2], %s1735
          %1738 = dma.done %s1733, 32
        $region48: #{tpu_custom_call.1} parent=43 // pred_fallthru
          _
      $region44: #{tpu_custom_call.1} parent=5 // pred_fallthru
        _
    $region6: #{tpu_custom_call.1} parent=1 // loop_footer
      %s17 = sadd.s32 1, %s13
    $region7: #{tpu_custom_call.1} parent=1 // loop_footer_branch
      %12 = sbr.rel target = $region3
    $region8: #{tpu_custom_call.1} parent=1 // loop_exit
      _
    %1739 = vsyncpa [#allocation3], 1
    %s1740 = scalar_lea.sflag [#allocation3], 1
    %1741 = vsyncpa %s1740, 1

</llo_original>
